<compile_context>
chip_gen: v5e
topology: v5e:2x2
jax: 0.10.0
libtpu: 0.0.40
codegen_flags: <defaults>
</compile_context>

<pallas_src>
import functools

import jax
import jax.numpy as jnp
from jax.experimental import pallas as pl
from jax.experimental.pallas import tpu as pltpu


# ----------------------------------------------------------------------------- helpers
try:  # generation-aware VMEM budget (v7x: 64 MiB physical; v5e/v6e: 128 MiB)
    _VMEM_CAP = int(pltpu.get_tpu_info().vmem_capacity_bytes)
except Exception:  # pragma: no cover - conservative fallback
    _VMEM_CAP = 128 * 1024 * 1024
_VMEM_LIMIT = min(int(_VMEM_CAP * 0.7), 96 * 1024 * 1024)


def _cp(dims=None):
    if dims is None:
        return pltpu.CompilerParams(vmem_limit_bytes=_VMEM_LIMIT)
    return pltpu.CompilerParams(dimension_semantics=dims, vmem_limit_bytes=_VMEM_LIMIT)


def _sigmoid(x):
    # exp + approx reciprocal both run on the EUP slot (free next to VPU/MXU work).
    return pl.reciprocal(1.0 + jnp.exp(-x), approx=True)


def _round_up(x, m):
    return (x + m - 1) // m * m


def _pad128(c):
    return _round_up(c, 128)


def _choose_div(n, candidates):
    for c in candidates:
        if n % c == 0:
            return c
    return None


def _largest_divisor(n, cap):
    for d in range(min(n, cap), 0, -1):
        if n % d == 0:
            return d
    return 1


def _vmem_specs(n):
    return [pl.BlockSpec(memory_space=pltpu.MemorySpace.VMEM) for _ in range(n)]


_OUT_SPEC = pl.BlockSpec(memory_space=pltpu.MemorySpace.VMEM)


# ----------------------------------------------------------------------------- tiled GEMM kernel
# y = silu?(x @ w + bias), tiled over (M, Cout, K) with an f32 accumulator scratch.
def _gemm_kernel(act):
    def kernel(x_ref, w_ref, b_ref, o_ref, acc_ref):
        k = pl.program_id(2)

        @pl.when(k == 0)
        def _():
            acc_ref[...] = jnp.zeros_like(acc_ref)

        acc_ref[...] += jnp.dot(x_ref[...], w_ref[...],
                                preferred_element_type=jnp.float32)

        @pl.when(k == pl.num_programs(2) - 1)
        def _():
            y = acc_ref[...] + b_ref[...]
            if act == "silu":
                y = y * _sigmoid(y)
            o_ref[...] = y.astype(o_ref.dtype)

    return kernel


@functools.partial(jax.jit, static_argnames=("act", "out_dtype"))
def gemm(x, w, bias, *, act="none", out_dtype=jnp.bfloat16):
    M, K = x.shape
    Cout = w.shape[1]
    # Lane-dense output tiles (Cout is 128-padded at init); tn capped at 256 (MXU width).
    tn = _choose_div(Cout, (256, 128)) or Cout
    tk = K if K <= 512 else (_choose_div(K, (512, 256, 128)) or K)
    if M >= 512:
        tm = _choose_div(M, (512, 256, 128)) or 512
    else:
        tm = _round_up(M, 8)
    Mp = _round_up(M, tm)
    xp = jnp.pad(x, ((0, Mp - M), (0, 0)))          # no-op when already aligned
    grid = (Mp // tm, Cout // tn, K // tk)
    y = pl.pallas_call(
        _gemm_kernel(act),
        grid=grid,
        in_specs=[pl.BlockSpec((tm, tk), lambda i, j, k: (i, k)),
                  pl.BlockSpec((tk, tn), lambda i, j, k: (k, j)),
                  pl.BlockSpec((1, tn), lambda i, j, k: (0, j))],
        out_specs=pl.BlockSpec((tm, tn), lambda i, j, k: (i, j)),
        out_shape=jax.ShapeDtypeStruct((Mp, Cout), out_dtype),
        scratch_shapes=[pltpu.VMEM((tm, tn), jnp.float32)],
        compiler_params=_cp(("parallel", "parallel", "arbitrary")),
    )(xp, w, bias.reshape(1, Cout))
    return y[:M]


def pointwise_conv(x, w, bias, act="none"):
    """1x1 conv (+ folded BN, optional SiLU). x: NHWC bf16, channels 128-padded."""
    N, H, W, Cin = x.shape
    Cout = w.shape[1]
    y = gemm(x.reshape(N * H * W, Cin), w, bias, act=act)
    return y.reshape(N, H, W, Cout)


# ----------------------------------------------------------------------------- depthwise conv kernel
# Row-strip tiled: grid=(N, Hout//th).  The padded (and, for stride 2, space-to-depth packed)
# input lives in HBM (memory_space=pl.ANY); each strip (+ halo rows) is fetched with a manual
# async copy.  The SE global-average pool of the SiLU output is accumulated in a VMEM scratch
# and written on the last strip (pl.when), so the activations are read exactly once.
def _dw_kernel(K, s, th, Hin_strip, Wout, C, inv_area):
    def kernel(x_hbm, w_ref, b_ref, y_ref, p_ref, xbuf, psum, sem):
        n = pl.program_id(0)
        r = pl.program_id(1)

        cp = pltpu.make_async_copy(x_hbm.at[n, pl.ds(r * th, Hin_strip)], xbuf, sem)
        cp.start()

        @pl.when(r == 0)
        def _():
            psum[...] = jnp.zeros_like(psum)

        cp.wait()

        w = w_ref[...].astype(jnp.float32)                    # (K, K, C)
        xs = xbuf[...]                                        # (Hin_strip, Wq, s*s*C) bf16
        acc = None
        for kh in range(K):
            for kw in range(K):
                g = (kh % s) * s + (kw % s)                   # channel group (stride parity)
                ro, co = kh // s, kw // s
                tap = xs[ro:ro + th, co:co + Wout, g * C:(g + 1) * C].astype(jnp.float32)
                contrib = tap * w[kh, kw][None, None, :]
                acc = contrib if acc is None else acc + contrib
        y = acc + b_ref[...]                                  # folded-BN bias (1,1,C)
        y = y * _sigmoid(y)                                   # SiLU
        y_ref[...] = y[None].astype(y_ref.dtype)
        psum[...] += jnp.sum(y, axis=(0, 1))[None, :]

        @pl.when(r == pl.num_programs(1) - 1)
        def _():
            p_ref[...] = psum[...] * inv_area                 # fused SE avg-pool

    return kernel


@functools.partial(jax.jit, static_argnames=("stride",))
def depthwise_conv(x, w, bias, *, stride):
    """KxK depthwise conv ('same', timm Conv2dSame) + folded BN bias + SiLU.
    Returns (activations bf16, per-image channel means f32 for SE)."""
    N, H, W, C = x.shape
    K = w.shape[0]
    s = stride
    Hout, Wout = -(-H // s), -(-W // s)
    ph = max((Hout - 1) * s + K - H, 0)
    pw = max((Wout - 1) * s + K - W, 0)
    xp = jnp.pad(x, ((0, 0), (ph // 2, ph - ph // 2), (pw // 2, pw - pw // 2), (0, 0)))
    if s > 1:
        # Space-to-depth: fold the stride into channel groups (fused with the pad by XLA).
        Hp, Wp = xp.shape[1], xp.shape[2]
        Hq, Wq = -(-Hp // s), -(-Wp // s)
        xp = jnp.pad(xp, ((0, 0), (0, Hq * s - Hp), (0, Wq * s - Wp), (0, 0)))
        xp = xp.reshape(N, Hq, s, Wq, s, C).transpose(0, 1, 3, 2, 4, 5)
        xp = xp.reshape(N, Hq, Wq, s * s * C)
    Hq, Wq, Cg = xp.shape[1], xp.shape[2], xp.shape[3]

    halo = (K - 1) // s
    th = _largest_divisor(Hout, 32)                           # <=32 output rows per strip
    Hin_strip = th + halo
    nstrips = Hout // th
    inv_area = 1.0 / float(Hout * Wout)

    out_shape = (jax.ShapeDtypeStruct((N, Hout, Wout, C), jnp.bfloat16),
                 jax.ShapeDtypeStruct((N, C), jnp.float32))
    return pl.pallas_call(
        _dw_kernel(K, s, th, Hin_strip, Wout, C, inv_area),
        grid=(N, nstrips),
        in_specs=[pl.BlockSpec(memory_space=pl.ANY),          # packed input stays in HBM
                  pl.BlockSpec((K, K, C), lambda n, r: (0, 0, 0)),
                  pl.BlockSpec((1, 1, C), lambda n, r: (0, 0, 0))],
        out_specs=(pl.BlockSpec((1, th, Wout, C), lambda n, r: (n, r, 0, 0)),
                   pl.BlockSpec((1, C), lambda n, r: (n, 0))),
        out_shape=out_shape,
        scratch_shapes=[pltpu.VMEM((Hin_strip, Wq, Cg), jnp.bfloat16),
                        pltpu.VMEM((1, C), jnp.float32),
                        pltpu.SemaphoreType.DMA(())],
        compiler_params=_cp(("parallel", "arbitrary")),
    )(xp, w, bias.reshape(1, 1, C))


# ----------------------------------------------------------------------------- SE gate MLP (tiny)
def _se_mlp_kernel(p_ref, w1_ref, b1_ref, w2_ref, b2_ref, g_ref):
    s = p_ref[...].astype(w1_ref.dtype)                                        # (N, C)
    h = jnp.dot(s, w1_ref[...], preferred_element_type=jnp.float32) + b1_ref[...]
    h = h * _sigmoid(h)                                                        # SiLU
    g = jnp.dot(h.astype(w2_ref.dtype), w2_ref[...],
                preferred_element_type=jnp.float32) + b2_ref[...]
    g_ref[...] = _sigmoid(g).astype(g_ref.dtype)                               # bf16 gate


@jax.jit
def se_gate(pooled, w1, b1, w2, b2):
    N, C = pooled.shape
    rd = w1.shape[1]
    return pl.pallas_call(
        _se_mlp_kernel,
        out_shape=jax.ShapeDtypeStruct((N, C), jnp.bfloat16),
        in_specs=_vmem_specs(5),
        out_specs=_OUT_SPEC,
        compiler_params=_cp(),
    )(pooled, w1, b1.reshape(1, rd), w2, b2.reshape(1, C))


# ----------------------------------------------------------------------------- fused SE-gate + projection conv
# out = (x * gate[n]) @ W_pw + bias [+ residual]; gridded over (batch, row-tiles); bf16 gate mul.
def _seproj_kernel(has_res):
    def kernel(x_ref, g_ref, w_ref, b_ref, *rest):
        if has_res:
            r_ref, o_ref = rest
        else:
            (o_ref,) = rest
        xg = x_ref[0] * g_ref[...]                               # bf16 VPU multiply
        y = jnp.dot(xg, w_ref[...], preferred_element_type=jnp.float32)
        y = y + b_ref[...]
        if has_res:
            y = y + r_ref[0].astype(jnp.float32)
        o_ref[...] = y[None, :, :].astype(o_ref.dtype)

    return kernel


@jax.jit
def se_project(y, gate, w, bias, residual=None):
    N, HW, Cmid = y.shape
    Cout = w.shape[1]
    if HW >= 256:
        tr = _choose_div(HW, (256, 128)) or 256
    else:
        tr = _round_up(HW, 8)
    HWp = _round_up(HW, tr)
    yp = jnp.pad(y, ((0, 0), (0, HWp - HW), (0, 0)))
    in_specs = [pl.BlockSpec((1, tr, Cmid), lambda n, m: (n, m, 0)),
                pl.BlockSpec((1, Cmid), lambda n, m: (n, 0)),
                pl.BlockSpec((Cmid, Cout), lambda n, m: (0, 0)),
                pl.BlockSpec((1, Cout), lambda n, m: (0, 0))]
    args = [yp, gate, w, bias.reshape(1, Cout)]
    if residual is not None:
        in_specs.append(pl.BlockSpec((1, tr, Cout), lambda n, m: (n, m, 0)))
        args.append(jnp.pad(residual, ((0, 0), (0, HWp - HW), (0, 0))))
    out = pl.pallas_call(
        _seproj_kernel(residual is not None),
        grid=(N, HWp // tr),
        in_specs=in_specs,
        out_specs=pl.BlockSpec((1, tr, Cout), lambda n, m: (n, m, 0)),
        out_shape=jax.ShapeDtypeStruct((N, HWp, Cout), jnp.bfloat16),
        compiler_params=_cp(("parallel", "parallel")),
    )(*args)
    return out[:, :HW]


# ----------------------------------------------------------------------------- global average pool
def _pool_kernel(x_ref, o_ref):
    o_ref[...] = jnp.mean(x_ref[...].astype(jnp.float32), axis=(1, 2))


@jax.jit
def global_pool(x):
    N, H, W, C = x.shape
    tc = 128 if C % 128 == 0 else C
    return pl.pallas_call(
        _pool_kernel,
        grid=(N, C // tc),
        in_specs=[pl.BlockSpec((1, H, W, tc), lambda n, c: (n, 0, 0, c))],
        out_specs=pl.BlockSpec((1, tc), lambda n, c: (n, c)),
        out_shape=jax.ShapeDtypeStruct((N, C), jnp.float32),
        compiler_params=_cp(("parallel", "parallel")),
    )(x)


# ----------------------------------------------------------------------------- stem conv (im2col + GEMM)
def stem_conv(x, w, bias):
    """3x3 conv, stride 2, 'same', 3->48 ch (padded to 128), + folded BN + SiLU."""
    N, H, W, C = x.shape
    K, s = 3, 2
    Ho, Wo = -(-H // s), -(-W // s)
    ph = max((Ho - 1) * s + K - H, 0)
    pw = max((Wo - 1) * s + K - W, 0)
    xp = jnp.pad(x, ((0, 0), (ph // 2, ph - ph // 2), (pw // 2, pw - pw // 2), (0, 0)))
    cols = [xp[:, kh:kh + s * (Ho - 1) + 1:s, kw:kw + s * (Wo - 1) + 1:s, :]
            for kh in range(K) for kw in range(K)]
    patches = jnp.concatenate(cols, axis=-1)                  # (N, Ho, Wo, 27) bf16
    kpad = w.shape[0] - patches.shape[-1]                     # 27 -> 32 (lane-friendly K)
    patches = jnp.pad(patches, ((0, 0), (0, 0), (0, 0), (0, kpad)))
    return pointwise_conv(patches, w, bias, act="silu")


# ----------------------------------------------------------------------------- EfficientNet-B4 config / params
# (expand_ratio, kernel, stride, out_channels, repeats) after B4 width/depth scaling.
_B4_STAGES = [
    (1, 3, 1, 24, 2),
    (6, 3, 2, 32, 4),
    (6, 5, 2, 56, 4),
    (6, 3, 2, 112, 6),
    (6, 5, 1, 160, 6),
    (6, 5, 2, 272, 8),
    (6, 3, 1, 448, 2),
]
_STEM_CH = 48
_HEAD_CH = 1792


class _KeyGen:
    def __init__(self, key):
        self.key = key

    def __call__(self):
        self.key, sub = jax.random.split(self.key)
        return sub


def _he(key, shape, fan_in):
    return jax.random.normal(key, shape, jnp.float32) * jnp.sqrt(2.0 / fan_in)


def _bn(kg, c):
    scale = 1.0 + 0.1 * jax.random.normal(kg(), (c,), jnp.float32)
    bias = 0.1 * jax.random.normal(kg(), (c,), jnp.float32)
    return scale, bias


def _conv_bn(kg, cin, cin_p, cout, cout_p):
    """BN scale folded into weights; weights/bias zero-padded to 128-aligned channel counts."""
    w = _he(kg(), (cin, cout), cin)
    s, b = _bn(kg, cout)
    w = w * s[None, :]
    w = jnp.pad(w, ((0, cin_p - cin), (0, cout_p - cout))).astype(jnp.bfloat16)
    b = jnp.pad(b, (0, cout_p - cout))
    return w, b


def init_params(seed, num_classes):
    kg = _KeyGen(jax.random.PRNGKey(seed))
    p = {"num_classes": num_classes}

    stem_p = _pad128(_STEM_CH)
    p["stem_w"], p["stem_b"] = _conv_bn(kg, 3 * 3 * 3, 32, _STEM_CH, stem_p)

    blocks = []
    in_c, in_p = _STEM_CH, stem_p
    for (exp, k, stride, out_c, n) in _B4_STAGES:
        stage = []
        for i in range(n):
            s = stride if i == 0 else 1
            mid, mid_p = in_c * exp, _pad128(in_c * exp)
            out_p = _pad128(out_c)
            rd = max(1, in_c // 4)
            blk = {"kernel": k, "stride": s, "expand": exp,
                   "has_res": (s == 1 and in_c == out_c)}
            if exp != 1:
                blk["exp_w"], blk["exp_b"] = _conv_bn(kg, in_c, in_p, mid, mid_p)
            dw = _he(kg(), (k, k, mid), k * k)
            dws, dwb = _bn(kg, mid)
            dw = dw * dws[None, None, :]
            blk["dw_w"] = jnp.pad(dw, ((0, 0), (0, 0), (0, mid_p - mid))).astype(jnp.bfloat16)
            blk["dw_b"] = jnp.pad(dwb, (0, mid_p - mid))
            blk["se_w1"] = jnp.pad(_he(kg(), (mid, rd), mid),
                                   ((0, mid_p - mid), (0, 0))).astype(jnp.bfloat16)
            blk["se_b1"] = jnp.zeros((rd,), jnp.float32)
            blk["se_w2"] = jnp.pad(_he(kg(), (rd, mid), rd),
                                   ((0, 0), (0, mid_p - mid))).astype(jnp.bfloat16)
            blk["se_b2"] = jnp.zeros((mid_p,), jnp.float32)
            blk["pw_w"], blk["pw_b"] = _conv_bn(kg, mid, mid_p, out_c, out_p)
            stage.append(blk)
            in_c, in_p = out_c, out_p
        blocks.append(stage)
    p["blocks"] = blocks

    p["head_w"], p["head_b"] = _conv_bn(kg, in_c, in_p, _HEAD_CH, _HEAD_CH)
    nc_p = _pad128(num_classes)
    cls_w = _he(kg(), (_HEAD_CH, num_classes), _HEAD_CH)
    p["cls_w"] = jnp.pad(cls_w, ((0, 0), (0, nc_p - num_classes))).astype(jnp.bfloat16)
    p["cls_b"] = jnp.zeros((nc_p,), jnp.float32)
    return p


# ----------------------------------------------------------------------------- forward
def efficientnet_b4_forward(params, x_nchw):
    x = jnp.transpose(x_nchw, (0, 2, 3, 1)).astype(jnp.bfloat16)      # NCHW -> NHWC, bf16
    x = stem_conv(x, params["stem_w"], params["stem_b"])

    for stage in params["blocks"]:
        for blk in stage:
            shortcut = x
            y = x
            if blk["expand"] != 1:                                     # expansion 1x1 conv
                y = pointwise_conv(y, blk["exp_w"], blk["exp_b"], act="silu")
            # depthwise conv + SiLU, fused SE average pool (row-strip tiled, manual halo DMA)
            y, pooled = depthwise_conv(y, blk["dw_w"], blk["dw_b"], stride=blk["stride"])
            gate = se_gate(pooled, blk["se_w1"], blk["se_b1"], blk["se_w2"], blk["se_b2"])
            N, Ho, Wo, Cmid = y.shape
            Cout = blk["pw_w"].shape[1]
            res = shortcut.reshape(N, Ho * Wo, Cout) if blk["has_res"] else None
            # fused SE-gate * x @ W_pw + bias (+ residual)
            out = se_project(y.reshape(N, Ho * Wo, Cmid), gate,
                             blk["pw_w"], blk["pw_b"], res)
            x = out.reshape(N, Ho, Wo, Cout)

    x = pointwise_conv(x, params["head_w"], params["head_b"], act="silu")
    x = global_pool(x)                                                 # (N, 1792) f32
    logits = gemm(x.astype(jnp.bfloat16), params["cls_w"], params["cls_b"],
                  act="none", out_dtype=jnp.float32)
    return logits[:, :params["num_classes"]]                           # drop channel padding


# ----------------------------------------------------------------------------- main
if __name__ == "__main__":
    num_classes = 10
    params = init_params(0, num_classes)

    key = jax.random.PRNGKey(0)
    x = jax.random.normal(key, (2, 3, 32, 32), jnp.float32)   # NCHW, like the PyTorch module

    out = efficientnet_b4_forward(params, x)
    out = jax.block_until_ready(out)

    assert out.shape == (2, num_classes), out.shape
    assert bool(jnp.all(jnp.isfinite(out)))
    print("KERNEL_OK")
</pallas_src>

<mosaic_0001>
module attributes {stable_mosaic.version = 11 : i64} {
  func.func @kernel(%arg0: i32, %arg1: i32, %arg2: i32, %arg3: memref<512x32xbf16, #tpu.memory_space<vmem>>, %arg4: memref<32x128xbf16, #tpu.memory_space<vmem>>, %arg5: memref<1x128xf32, #tpu.memory_space<vmem>>, %arg6: memref<512x128xbf16, #tpu.memory_space<vmem>>, %arg7: memref<512x128xf32, #tpu.memory_space<vmem>>) attributes {dimension_semantics = [#tpu.dimension_semantics<parallel>, #tpu.dimension_semantics<parallel>, #tpu.dimension_semantics<arbitrary>], iteration_bounds = array<i64: 1, 1, 1>, scalar_prefetch = 0 : i64, scratch_operands = 1 : i64, tpu.core_type = #tpu.core_type<tc>, window_params = [{transform_indices = @transform_0, window_bounds = array<i64: 512, 32>}, {transform_indices = @transform_1, window_bounds = array<i64: 32, 128>}, {transform_indices = @transform_2, window_bounds = array<i64: 1, 128>}, {transform_indices = @transform_3, window_bounds = array<i64: 512, 128>}]} {
    %c0_i32 = arith.constant 0 : i32
    %0 = arith.cmpi eq, %arg2, %c0_i32 : i32
    %1 = arith.extui %0 : i1 to i32
    %c0_i32_0 = arith.constant 0 : i32
    %2 = arith.cmpi ne, %1, %c0_i32_0 : i32
    scf.if %2 {
      %cst_10 = arith.constant 0.000000e+00 : f32
      %12 = vector.broadcast %cst_10 : f32 to vector<512x128xf32>
      %c0_11 = arith.constant 0 : index
      %c0_12 = arith.constant 0 : index
      %13 = vector.load %arg7[%c0_11, %c0_12] : memref<512x128xf32, #tpu.memory_space<vmem>>, vector<512x128xf32>
      tpu.vector_store %arg7[%c0_11, %c0_12], %12 {strides = array<i32>} : memref<512x128xf32, #tpu.memory_space<vmem>>, vector<512x128xf32>,
    } else {
    }
    %c0 = arith.constant 0 : index
    %c0_1 = arith.constant 0 : index
    %3 = vector.load %arg7[%c0, %c0_1] : memref<512x128xf32, #tpu.memory_space<vmem>>, vector<512x128xf32>
    %c0_2 = arith.constant 0 : index
    %c0_3 = arith.constant 0 : index
    %4 = vector.load %arg3[%c0_2, %c0_3] : memref<512x32xbf16, #tpu.memory_space<vmem>>, vector<512x32xbf16>
    %c0_4 = arith.constant 0 : index
    %c0_5 = arith.constant 0 : index
    %5 = vector.load %arg4[%c0_4, %c0_5] : memref<32x128xbf16, #tpu.memory_space<vmem>>, vector<32x128xbf16>
    %cst = arith.constant dense<0.000000e+00> : vector<512x128xf32>
    %6 = tpu.matmul %4, %5, %cst {dimension_numbers = #tpu.dot_dimension_numbers<[1], [0], [0], [1], [0, 0, 1, 1], [], []>} : vector<512x32xbf16>, vector<32x128xbf16>, vector<512x128xf32> -> vector<512x128xf32>
    %7 = arith.addf %3, %6 : vector<512x128xf32>
    %c0_6 = arith.constant 0 : index
    %c0_7 = arith.constant 0 : index
    %8 = vector.load %arg7[%c0_6, %c0_7] : memref<512x128xf32, #tpu.memory_space<vmem>>, vector<512x128xf32>
    tpu.vector_store %arg7[%c0_6, %c0_7], %7 {strides = array<i32>} : memref<512x128xf32, #tpu.memory_space<vmem>>, vector<512x128xf32>,
    %c0_i32_8 = arith.constant 0 : i32
    %9 = arith.cmpi eq, %arg2, %c0_i32_8 : i32
    %10 = arith.extui %9 : i1 to i32
    %c0_i32_9 = arith.constant 0 : i32
    %11 = arith.cmpi ne, %10, %c0_i32_9 : i32
    scf.if %11 {
      %c0_10 = arith.constant 0 : index
      %c0_11 = arith.constant 0 : index
      %12 = vector.load %arg7[%c0_10, %c0_11] : memref<512x128xf32, #tpu.memory_space<vmem>>, vector<512x128xf32>
      %c0_12 = arith.constant 0 : index
      %c0_13 = arith.constant 0 : index
      %13 = vector.load %arg5[%c0_12, %c0_13] : memref<1x128xf32, #tpu.memory_space<vmem>>, vector<1x128xf32>
      %14 = vector.broadcast %13 : vector<1x128xf32> to vector<512x128xf32>
      %15 = arith.addf %12, %14 : vector<512x128xf32>
      %cst_14 = arith.constant 0.000000e+00 : f32
      %16 = vector.broadcast %cst_14 : f32 to vector<512x128xf32>
      %17 = arith.subf %16, %15 : vector<512x128xf32>
      %18 = math.exp %17 : vector<512x128xf32>
      %cst_15 = arith.constant 1.000000e+00 : f32
      %19 = vector.broadcast %cst_15 : f32 to vector<512x128xf32>
      %20 = arith.addf %19, %18 : vector<512x128xf32>
      %21 = tpu.reciprocal %20 {approx = true} : vector<512x128xf32> -> vector<512x128xf32>
      %22 = arith.mulf %15, %21 : vector<512x128xf32>
      %23 = arith.truncf %22 : vector<512x128xf32> to vector<512x128xbf16>
      %c0_16 = arith.constant 0 : index
      %c0_17 = arith.constant 0 : index
      %24 = vector.load %arg6[%c0_16, %c0_17] : memref<512x128xbf16, #tpu.memory_space<vmem>>, vector<512x128xbf16>
      tpu.vector_store %arg6[%c0_16, %c0_17], %23 {strides = array<i32>} : memref<512x128xbf16, #tpu.memory_space<vmem>>, vector<512x128xbf16>,
    } else {
    }
    return
  }
  func.func @transform_0(%arg0: i32, %arg1: i32, %arg2: i32) -> (i32, i32) {
    %c0_i32 = arith.constant 0 : i32
    return %arg0, %arg2 : i32, i32
  }
  func.func @transform_1(%arg0: i32, %arg1: i32, %arg2: i32) -> (i32, i32) {
    %c0_i32 = arith.constant 0 : i32
    return %arg2, %arg1 : i32, i32
  }
  func.func @transform_2(%arg0: i32, %arg1: i32, %arg2: i32) -> (i32, i32) {
    %c0_i32 = arith.constant 0 : i32
    %c0_i32_0 = arith.constant 0 : i32
    return %c0_i32, %arg1 : i32, i32
  }
  func.func @transform_3(%arg0: i32, %arg1: i32, %arg2: i32) -> (i32, i32) {
    %c0_i32 = arith.constant 0 : i32
    return %arg0, %arg1 : i32, i32
  }
}

</mosaic_0001>

<llo_original>
// kernel: gemm.1
$region0: #{gemm.1}
  #allocation0 [shape = 'u32[]', space=smem, size = 0x4, offset = 0x4, fixed_abs, tag = 'smem constant byte address 0x4 - core index']
  #allocation1 [shape = 'u32[72,128]{1,0:T(1,128)}', space=vmem, size = 0x9000, scoped, tag = 'internal scratch']
  #allocation2 [shape = 'f32[512,128]{1,0:T(8,128)}', space=vmem, size = 0x40000, scoped, tag = 'scratch operand']
  %s0 = inlined_call_operand.vmem [shape: bf16[512,32], index: 0, kind: input, shape index: {}]
  %s1 = inlined_call_operand.vmem [shape: bf16[32,128], index: 1, kind: input, shape index: {}]
  %s2 = inlined_call_operand.vmem [shape: f32[1,128], index: 2, kind: input, shape index: {}]
  %s3 = inlined_call_operand.hbm [shape: bf16[512,128], index: 3, kind: output, shape index: {}]
  %s4 = sld [smem:[#allocation0]]
  $region30: #{gemm.1} parent=0
    _
  %s6 = ssub.s32 1, %s4
  %s7 = scalar_select 0, %s6, %s4
  $region1: #{gemm.1} parent=0
    #allocation3 [shape = 'u8[131072]{0}', space=vmem, size = 0x20000, scoped, tag = 'output window, operand 0, single buffered']
    #allocation4 [shape = 's32[1]{0}', space=sflag, size = 0x4, scoped, tag = 'scoped memory for gemm.1']
    %8 = vsyncpa [#allocation4], 0
    // Predicated region
    $region2: #{gemm.1} parent=1 // pred_check
      _
    $region3: #{gemm.1} parent=1 // pred_check_branch
      %10 = sbr.rel (0) target = $region5
    $region4: #{gemm.1} parent=1 // pred_region
      _
    $region5: #{gemm.1} parent=1 // pred_fallthru
      _
    // Predicated region
    $region6: #{gemm.1} parent=1 // pred_check
      _
    $region7: #{gemm.1} parent=1 // pred_check_branch
      %12 = sbr.rel (0) target = $region9
    $region8: #{gemm.1} parent=1 // pred_region
      _
    $region9: #{gemm.1} parent=1 // pred_fallthru
      _
    // Predicated region
    $region10: #{gemm.1} parent=1 // pred_check
      _
    $region11: #{gemm.1} parent=1 // pred_check_branch
      %14 = sbr.rel (0) target = $region13
    $region12: #{gemm.1} parent=1 // pred_region
      _
    $region13: #{gemm.1} parent=1 // pred_fallthru
      _
    %p16 = scmp.eq.s32.totalorder 0, 0
    // Predicated region
    $region14: #{gemm.1} parent=1 // pred_check
      %p17 = pneg %p16
    $region15: #{gemm.1} parent=1 // pred_check_branch
      %19 = sbr.rel (%p17) target = $region17
    $region16: #{gemm.1} parent=1 // pred_region
      %20 = vst [vmem:[#allocation2] sm:$0xff] 0.0
      %21 = vst [vmem:[#allocation2 + $0x8] sm:$0xff] 0.0
      %22 = vst [vmem:[#allocation2 + $0x10] sm:$0xff] 0.0
      %23 = vst [vmem:[#allocation2 + $0x18] sm:$0xff] 0.0
      %24 = vst [vmem:[#allocation2 + $0x20] sm:$0xff] 0.0
      %25 = vst [vmem:[#allocation2 + $0x28] sm:$0xff] 0.0
      %26 = vst [vmem:[#allocation2 + $0x30] sm:$0xff] 0.0
      %27 = vst [vmem:[#allocation2 + $0x38] sm:$0xff] 0.0
      %28 = vst [vmem:[#allocation2 + $0x40] sm:$0xff] 0.0
      %29 = vst [vmem:[#allocation2 + $0x48] sm:$0xff] 0.0
      %30 = vst [vmem:[#allocation2 + $0x50] sm:$0xff] 0.0
      %31 = vst [vmem:[#allocation2 + $0x58] sm:$0xff] 0.0
      %32 = vst [vmem:[#allocation2 + $0x60] sm:$0xff] 0.0
      %33 = vst [vmem:[#allocation2 + $0x68] sm:$0xff] 0.0
      %34 = vst [vmem:[#allocation2 + $0x70] sm:$0xff] 0.0
      %35 = vst [vmem:[#allocation2 + $0x78] sm:$0xff] 0.0
      %36 = vst [vmem:[#allocation2 + $0x80] sm:$0xff] 0.0
      %37 = vst [vmem:[#allocation2 + $0x88] sm:$0xff] 0.0
      %38 = vst [vmem:[#allocation2 + $0x90] sm:$0xff] 0.0
      %39 = vst [vmem:[#allocation2 + $0x98] sm:$0xff] 0.0
      %40 = vst [vmem:[#allocation2 + $0xa0] sm:$0xff] 0.0
      %41 = vst [vmem:[#allocation2 + $0xa8] sm:$0xff] 0.0
      %42 = vst [vmem:[#allocation2 + $0xb0] sm:$0xff] 0.0
      %43 = vst [vmem:[#allocation2 + $0xb8] sm:$0xff] 0.0
      %44 = vst [vmem:[#allocation2 + $0xc0] sm:$0xff] 0.0
      %45 = vst [vmem:[#allocation2 + $0xc8] sm:$0xff] 0.0
      %46 = vst [vmem:[#allocation2 + $0xd0] sm:$0xff] 0.0
      %47 = vst [vmem:[#allocation2 + $0xd8] sm:$0xff] 0.0
      %48 = vst [vmem:[#allocation2 + $0xe0] sm:$0xff] 0.0
      %49 = vst [vmem:[#allocation2 + $0xe8] sm:$0xff] 0.0
      %50 = vst [vmem:[#allocation2 + $0xf0] sm:$0xff] 0.0
      %51 = vst [vmem:[#allocation2 + $0xf8] sm:$0xff] 0.0
      %52 = vst [vmem:[#allocation2 + $0x100] sm:$0xff] 0.0
      %53 = vst [vmem:[#allocation2 + $0x108] sm:$0xff] 0.0
      %54 = vst [vmem:[#allocation2 + $0x110] sm:$0xff] 0.0
      %55 = vst [vmem:[#allocation2 + $0x118] sm:$0xff] 0.0
      %56 = vst [vmem:[#allocation2 + $0x120] sm:$0xff] 0.0
      %57 = vst [vmem:[#allocation2 + $0x128] sm:$0xff] 0.0
      %58 = vst [vmem:[#allocation2 + $0x130] sm:$0xff] 0.0
      %59 = vst [vmem:[#allocation2 + $0x138] sm:$0xff] 0.0
      %60 = vst [vmem:[#allocation2 + $0x140] sm:$0xff] 0.0
      %61 = vst [vmem:[#allocation2 + $0x148] sm:$0xff] 0.0
      %62 = vst [vmem:[#allocation2 + $0x150] sm:$0xff] 0.0
      %63 = vst [vmem:[#allocation2 + $0x158] sm:$0xff] 0.0
      %64 = vst [vmem:[#allocation2 + $0x160] sm:$0xff] 0.0
      %65 = vst [vmem:[#allocation2 + $0x168] sm:$0xff] 0.0
      %66 = vst [vmem:[#allocation2 + $0x170] sm:$0xff] 0.0
      %67 = vst [vmem:[#allocation2 + $0x178] sm:$0xff] 0.0
      %68 = vst [vmem:[#allocation2 + $0x180] sm:$0xff] 0.0
      %69 = vst [vmem:[#allocation2 + $0x188] sm:$0xff] 0.0
      %70 = vst [vmem:[#allocation2 + $0x190] sm:$0xff] 0.0
      %71 = vst [vmem:[#allocation2 + $0x198] sm:$0xff] 0.0
      %72 = vst [vmem:[#allocation2 + $0x1a0] sm:$0xff] 0.0
      %73 = vst [vmem:[#allocation2 + $0x1a8] sm:$0xff] 0.0
      %74 = vst [vmem:[#allocation2 + $0x1b0] sm:$0xff] 0.0
      %75 = vst [vmem:[#allocation2 + $0x1b8] sm:$0xff] 0.0
      %76 = vst [vmem:[#allocation2 + $0x1c0] sm:$0xff] 0.0
      %77 = vst [vmem:[#allocation2 + $0x1c8] sm:$0xff] 0.0
      %78 = vst [vmem:[#allocation2 + $0x1d0] sm:$0xff] 0.0
      %79 = vst [vmem:[#allocation2 + $0x1d8] sm:$0xff] 0.0
      %80 = vst [vmem:[#allocation2 + $0x1e0] sm:$0xff] 0.0
      %81 = vst [vmem:[#allocation2 + $0x1e8] sm:$0xff] 0.0
      %82 = vst [vmem:[#allocation2 + $0x1f0] sm:$0xff] 0.0
      %83 = vst [vmem:[#allocation2 + $0x1f8] sm:$0xff] 0.0
    $region17: #{gemm.1} parent=1 // pred_fallthru
      _
    %v84 = vld [vmem:[#allocation2] sm:$0xff]
    %v85 = vld [vmem:[#allocation2 + $0x8] sm:$0xff]
    %v86 = vld [vmem:[#allocation2 + $0x10] sm:$0xff]
    %v87 = vld [vmem:[#allocation2 + $0x18] sm:$0xff]
    %v88 = vld [vmem:[#allocation2 + $0x20] sm:$0xff]
    %v89 = vld [vmem:[#allocation2 + $0x28] sm:$0xff]
    %v90 = vld [vmem:[#allocation2 + $0x30] sm:$0xff]
    %v91 = vld [vmem:[#allocation2 + $0x38] sm:$0xff]
    %v92 = vld [vmem:[#allocation2 + $0x40] sm:$0xff]
    %v93 = vld [vmem:[#allocation2 + $0x48] sm:$0xff]
    %v94 = vld [vmem:[#allocation2 + $0x50] sm:$0xff]
    %v95 = vld [vmem:[#allocation2 + $0x58] sm:$0xff]
    %v96 = vld [vmem:[#allocation2 + $0x60] sm:$0xff]
    %v97 = vld [vmem:[#allocation2 + $0x68] sm:$0xff]
    %v98 = vld [vmem:[#allocation2 + $0x70] sm:$0xff]
    %v99 = vld [vmem:[#allocation2 + $0x78] sm:$0xff]
    %v100 = vld [vmem:[#allocation2 + $0x80] sm:$0xff]
    %v101 = vld [vmem:[#allocation2 + $0x88] sm:$0xff]
    %v102 = vld [vmem:[#allocation2 + $0x90] sm:$0xff]
    %v103 = vld [vmem:[#allocation2 + $0x98] sm:$0xff]
    %v104 = vld [vmem:[#allocation2 + $0xa0] sm:$0xff]
    %v105 = vld [vmem:[#allocation2 + $0xa8] sm:$0xff]
    %v106 = vld [vmem:[#allocation2 + $0xb0] sm:$0xff]
    %v107 = vld [vmem:[#allocation2 + $0xb8] sm:$0xff]
    %v108 = vld [vmem:[#allocation2 + $0xc0] sm:$0xff]
    %v109 = vld [vmem:[#allocation2 + $0xc8] sm:$0xff]
    %v110 = vld [vmem:[#allocation2 + $0xd0] sm:$0xff]
    %v111 = vld [vmem:[#allocation2 + $0xd8] sm:$0xff]
    %v112 = vld [vmem:[#allocation2 + $0xe0] sm:$0xff]
    %v113 = vld [vmem:[#allocation2 + $0xe8] sm:$0xff]
    %v114 = vld [vmem:[#allocation2 + $0xf0] sm:$0xff]
    %v115 = vld [vmem:[#allocation2 + $0xf8] sm:$0xff]
    %v116 = vld [vmem:[#allocation2 + $0x100] sm:$0xff]
    %v117 = vld [vmem:[#allocation2 + $0x108] sm:$0xff]
    %v118 = vld [vmem:[#allocation2 + $0x110] sm:$0xff]
    %v119 = vld [vmem:[#allocation2 + $0x118] sm:$0xff]
    %v120 = vld [vmem:[#allocation2 + $0x120] sm:$0xff]
    %v121 = vld [vmem:[#allocation2 + $0x128] sm:$0xff]
    %v122 = vld [vmem:[#allocation2 + $0x130] sm:$0xff]
    %v123 = vld [vmem:[#allocation2 + $0x138] sm:$0xff]
    %v124 = vld [vmem:[#allocation2 + $0x140] sm:$0xff]
    %v125 = vld [vmem:[#allocation2 + $0x148] sm:$0xff]
    %v126 = vld [vmem:[#allocation2 + $0x150] sm:$0xff]
    %v127 = vld [vmem:[#allocation2 + $0x158] sm:$0xff]
    %v128 = vld [vmem:[#allocation2 + $0x160] sm:$0xff]
    %v129 = vld [vmem:[#allocation2 + $0x168] sm:$0xff]
    %v130 = vld [vmem:[#allocation2 + $0x170] sm:$0xff]
    %v131 = vld [vmem:[#allocation2 + $0x178] sm:$0xff]
    %v132 = vld [vmem:[#allocation2 + $0x180] sm:$0xff]
    %v133 = vld [vmem:[#allocation2 + $0x188] sm:$0xff]
    %v134 = vld [vmem:[#allocation2 + $0x190] sm:$0xff]
    %v135 = vld [vmem:[#allocation2 + $0x198] sm:$0xff]
    %v136 = vld [vmem:[#allocation2 + $0x1a0] sm:$0xff]
    %v137 = vld [vmem:[#allocation2 + $0x1a8] sm:$0xff]
    %v138 = vld [vmem:[#allocation2 + $0x1b0] sm:$0xff]
    %v139 = vld [vmem:[#allocation2 + $0x1b8] sm:$0xff]
    %v140 = vld [vmem:[#allocation2 + $0x1c0] sm:$0xff]
    %v141 = vld [vmem:[#allocation2 + $0x1c8] sm:$0xff]
    %v142 = vld [vmem:[#allocation2 + $0x1d0] sm:$0xff]
    %v143 = vld [vmem:[#allocation2 + $0x1d8] sm:$0xff]
    %v144 = vld [vmem:[#allocation2 + $0x1e0] sm:$0xff]
    %v145 = vld [vmem:[#allocation2 + $0x1e8] sm:$0xff]
    %v146 = vld [vmem:[#allocation2 + $0x1f0] sm:$0xff]
    %v147 = vld [vmem:[#allocation2 + $0x1f8] sm:$0xff]
    %v148 = vld [vmem:[%s0] sm:$0xf]
    %v149 = vld [vmem:[%s0 + $0x4] sm:$0xf]
    %v150 = vld [vmem:[%s0 + $0x8] sm:$0xf]
    %v151 = vld [vmem:[%s0 + $0xc] sm:$0xf]
    %v152 = vld [vmem:[%s0 + $0x10] sm:$0xf]
    %v153 = vld [vmem:[%s0 + $0x14] sm:$0xf]
    %v154 = vld [vmem:[%s0 + $0x18] sm:$0xf]
    %v155 = vld [vmem:[%s0 + $0x1c] sm:$0xf]
    %v156 = vld [vmem:[%s0 + $0x20] sm:$0xf]
    %v157 = vld [vmem:[%s0 + $0x24] sm:$0xf]
    %v158 = vld [vmem:[%s0 + $0x28] sm:$0xf]
    %v159 = vld [vmem:[%s0 + $0x2c] sm:$0xf]
    %v160 = vld [vmem:[%s0 + $0x30] sm:$0xf]
    %v161 = vld [vmem:[%s0 + $0x34] sm:$0xf]
    %v162 = vld [vmem:[%s0 + $0x38] sm:$0xf]
    %v163 = vld [vmem:[%s0 + $0x3c] sm:$0xf]
    %v164 = vld [vmem:[%s0 + $0x40] sm:$0xf]
    %v165 = vld [vmem:[%s0 + $0x44] sm:$0xf]
    %v166 = vld [vmem:[%s0 + $0x48] sm:$0xf]
    %v167 = vld [vmem:[%s0 + $0x4c] sm:$0xf]
    %v168 = vld [vmem:[%s0 + $0x50] sm:$0xf]
    %v169 = vld [vmem:[%s0 + $0x54] sm:$0xf]
    %v170 = vld [vmem:[%s0 + $0x58] sm:$0xf]
    %v171 = vld [vmem:[%s0 + $0x5c] sm:$0xf]
    %v172 = vld [vmem:[%s0 + $0x60] sm:$0xf]
    %v173 = vld [vmem:[%s0 + $0x64] sm:$0xf]
    %v174 = vld [vmem:[%s0 + $0x68] sm:$0xf]
    %v175 = vld [vmem:[%s0 + $0x6c] sm:$0xf]
    %v176 = vld [vmem:[%s0 + $0x70] sm:$0xf]
    %v177 = vld [vmem:[%s0 + $0x74] sm:$0xf]
    %v178 = vld [vmem:[%s0 + $0x78] sm:$0xf]
    %v179 = vld [vmem:[%s0 + $0x7c] sm:$0xf]
    %v180 = vld [vmem:[%s0 + $0x80] sm:$0xf]
    %v181 = vld [vmem:[%s0 + $0x84] sm:$0xf]
    %v182 = vld [vmem:[%s0 + $0x88] sm:$0xf]
    %v183 = vld [vmem:[%s0 + $0x8c] sm:$0xf]
    %v184 = vld [vmem:[%s0 + $0x90] sm:$0xf]
    %v185 = vld [vmem:[%s0 + $0x94] sm:$0xf]
    %v186 = vld [vmem:[%s0 + $0x98] sm:$0xf]
    %v187 = vld [vmem:[%s0 + $0x9c] sm:$0xf]
    %v188 = vld [vmem:[%s0 + $0xa0] sm:$0xf]
    %v189 = vld [vmem:[%s0 + $0xa4] sm:$0xf]
    %v190 = vld [vmem:[%s0 + $0xa8] sm:$0xf]
    %v191 = vld [vmem:[%s0 + $0xac] sm:$0xf]
    %v192 = vld [vmem:[%s0 + $0xb0] sm:$0xf]
    %v193 = vld [vmem:[%s0 + $0xb4] sm:$0xf]
    %v194 = vld [vmem:[%s0 + $0xb8] sm:$0xf]
    %v195 = vld [vmem:[%s0 + $0xbc] sm:$0xf]
    %v196 = vld [vmem:[%s0 + $0xc0] sm:$0xf]
    %v197 = vld [vmem:[%s0 + $0xc4] sm:$0xf]
    %v198 = vld [vmem:[%s0 + $0xc8] sm:$0xf]
    %v199 = vld [vmem:[%s0 + $0xcc] sm:$0xf]
    %v200 = vld [vmem:[%s0 + $0xd0] sm:$0xf]
    %v201 = vld [vmem:[%s0 + $0xd4] sm:$0xf]
    %v202 = vld [vmem:[%s0 + $0xd8] sm:$0xf]
    %v203 = vld [vmem:[%s0 + $0xdc] sm:$0xf]
    %v204 = vld [vmem:[%s0 + $0xe0] sm:$0xf]
    %v205 = vld [vmem:[%s0 + $0xe4] sm:$0xf]
    %v206 = vld [vmem:[%s0 + $0xe8] sm:$0xf]
    %v207 = vld [vmem:[%s0 + $0xec] sm:$0xf]
    %v208 = vld [vmem:[%s0 + $0xf0] sm:$0xf]
    %v209 = vld [vmem:[%s0 + $0xf4] sm:$0xf]
    %v210 = vld [vmem:[%s0 + $0xf8] sm:$0xf]
    %v211 = vld [vmem:[%s0 + $0xfc] sm:$0xf]
    %v212 = vld [vmem:[%s1] sm:$0xf]
    %v213 = vld [vmem:[%s1 + $0x4] sm:$0xf]
    %v214 = vld [vmem:[%s1 + $0x8] sm:$0xf]
    %v215 = vld [vmem:[%s1 + $0xc] sm:$0xf]
    %v280 = vunpack.c.l.b16 %v148
    %v281 = vunpack.c.l.b16 %v149
    %v282 = vunpack.c.l.b16 %v150
    %v283 = vunpack.c.l.b16 %v151
    %v284 = vunpack.c.l.b16 %v152
    %v285 = vunpack.c.l.b16 %v153
    %v286 = vunpack.c.l.b16 %v154
    %v287 = vunpack.c.l.b16 %v155
    %v288 = vunpack.c.l.b16 %v156
    %v289 = vunpack.c.l.b16 %v157
    %v290 = vunpack.c.l.b16 %v158
    %v291 = vunpack.c.l.b16 %v159
    %v292 = vunpack.c.l.b16 %v160
    %v293 = vunpack.c.l.b16 %v161
    %v294 = vunpack.c.l.b16 %v162
    %v295 = vunpack.c.l.b16 %v163
    %v296 = vunpack.c.l.b16 %v164
    %v297 = vunpack.c.l.b16 %v165
    %v298 = vunpack.c.l.b16 %v166
    %v299 = vunpack.c.l.b16 %v167
    %v300 = vunpack.c.l.b16 %v168
    %v301 = vunpack.c.l.b16 %v169
    %v302 = vunpack.c.l.b16 %v170
    %v303 = vunpack.c.l.b16 %v171
    %v304 = vunpack.c.l.b16 %v172
    %v305 = vunpack.c.l.b16 %v173
    %v306 = vunpack.c.l.b16 %v174
    %v307 = vunpack.c.l.b16 %v175
    %v308 = vunpack.c.l.b16 %v176
    %v309 = vunpack.c.l.b16 %v177
    %v310 = vunpack.c.l.b16 %v178
    %v311 = vunpack.c.l.b16 %v179
    %v312 = vunpack.c.l.b16 %v180
    %v313 = vunpack.c.l.b16 %v181
    %v314 = vunpack.c.l.b16 %v182
    %v315 = vunpack.c.l.b16 %v183
    %v316 = vunpack.c.l.b16 %v184
    %v317 = vunpack.c.l.b16 %v185
    %v318 = vunpack.c.l.b16 %v186
    %v319 = vunpack.c.l.b16 %v187
    %v320 = vunpack.c.l.b16 %v188
    %v321 = vunpack.c.l.b16 %v189
    %v322 = vunpack.c.l.b16 %v190
    %v323 = vunpack.c.l.b16 %v191
    %v324 = vunpack.c.l.b16 %v192
    %v325 = vunpack.c.l.b16 %v193
    %v326 = vunpack.c.l.b16 %v194
    %v327 = vunpack.c.l.b16 %v195
    %v328 = vunpack.c.l.b16 %v196
    %v329 = vunpack.c.l.b16 %v197
    %v330 = vunpack.c.l.b16 %v198
    %v331 = vunpack.c.l.b16 %v199
    %v332 = vunpack.c.l.b16 %v200
    %v333 = vunpack.c.l.b16 %v201
    %v334 = vunpack.c.l.b16 %v202
    %v335 = vunpack.c.l.b16 %v203
    %v336 = vunpack.c.l.b16 %v204
    %v337 = vunpack.c.l.b16 %v205
    %v338 = vunpack.c.l.b16 %v206
    %v339 = vunpack.c.l.b16 %v207
    %v340 = vunpack.c.l.b16 %v208
    %v341 = vunpack.c.l.b16 %v209
    %v342 = vunpack.c.l.b16 %v210
    %v343 = vunpack.c.l.b16 %v211
    %v344 = vpack.c.b16 %v281, %v280
    %v345 = vpack.c.b16 %v283, %v282
    %v346 = vpack.c.b16 %v285, %v284
    %v347 = vpack.c.b16 %v287, %v286
    %v348 = vpack.c.b16 %v289, %v288
    %v349 = vpack.c.b16 %v291, %v290
    %v350 = vpack.c.b16 %v293, %v292
    %v351 = vpack.c.b16 %v295, %v294
    %v352 = vpack.c.b16 %v297, %v296
    %v353 = vpack.c.b16 %v299, %v298
    %v354 = vpack.c.b16 %v301, %v300
    %v355 = vpack.c.b16 %v303, %v302
    %v356 = vpack.c.b16 %v305, %v304
    %v357 = vpack.c.b16 %v307, %v306
    %v358 = vpack.c.b16 %v309, %v308
    %v359 = vpack.c.b16 %v311, %v310
    %v360 = vpack.c.b16 %v313, %v312
    %v361 = vpack.c.b16 %v315, %v314
    %v362 = vpack.c.b16 %v317, %v316
    %v363 = vpack.c.b16 %v319, %v318
    %v364 = vpack.c.b16 %v321, %v320
    %v365 = vpack.c.b16 %v323, %v322
    %v366 = vpack.c.b16 %v325, %v324
    %v367 = vpack.c.b16 %v327, %v326
    %v368 = vpack.c.b16 %v329, %v328
    %v369 = vpack.c.b16 %v331, %v330
    %v370 = vpack.c.b16 %v333, %v332
    %v371 = vpack.c.b16 %v335, %v334
    %v372 = vpack.c.b16 %v337, %v336
    %v373 = vpack.c.b16 %v339, %v338
    %v374 = vpack.c.b16 %v341, %v340
    %v375 = vpack.c.b16 %v343, %v342
    %v380 = vunpack.c.l.b16 %v212
    %v381 = vunpack.c.l.b16 %v213
    %v382 = vunpack.c.l.b16 %v214
    %v383 = vunpack.c.l.b16 %v215
    %v384 = vpack.c.b16 %v381, %v380
    %v385 = vpack.c.b16 %v383, %v382
    %vm388 = vcmask 261120
    %v390 = vsel %vm388, %v344, 0
    %v393 = vsel %vm388, %v345, 0
    %v396 = vsel %vm388, %v346, 0
    %v399 = vsel %vm388, %v347, 0
    %v402 = vsel %vm388, %v348, 0
    %v405 = vsel %vm388, %v349, 0
    %v408 = vsel %vm388, %v350, 0
    %v411 = vsel %vm388, %v351, 0
    %v414 = vsel %vm388, %v352, 0
    %v417 = vsel %vm388, %v353, 0
    %v420 = vsel %vm388, %v354, 0
    %v423 = vsel %vm388, %v355, 0
    %v426 = vsel %vm388, %v356, 0
    %v429 = vsel %vm388, %v357, 0
    %v432 = vsel %vm388, %v358, 0
    %v435 = vsel %vm388, %v359, 0
    %v438 = vsel %vm388, %v360, 0
    %v441 = vsel %vm388, %v361, 0
    %v444 = vsel %vm388, %v362, 0
    %v447 = vsel %vm388, %v363, 0
    %v450 = vsel %vm388, %v364, 0
    %v453 = vsel %vm388, %v365, 0
    %v456 = vsel %vm388, %v366, 0
    %v459 = vsel %vm388, %v367, 0
    %v462 = vsel %vm388, %v368, 0
    %v465 = vsel %vm388, %v369, 0
    %v468 = vsel %vm388, %v370, 0
    %v471 = vsel %vm388, %v371, 0
    %v474 = vsel %vm388, %v372, 0
    %v477 = vsel %vm388, %v373, 0
    %v480 = vsel %vm388, %v374, 0
    %v483 = vsel %vm388, %v375, 0
    %485 = vmatpush.bf16.msra.mxu0 0
    %486 = vmatpush.bf16.msra.mxu0 0
    %487 = vmatpush.bf16.msra.mxu0 0
    %488 = vmatpush.bf16.msra.mxu0 0
    %489 = vmatpush.bf16.msra.mxu0 0
    %490 = vmatpush.bf16.msra.mxu0 0
    %491 = vmatpush.bf16.msra.mxu0 %v385
    %492 = vmatpush.bf16.msra.mxu0 %v384
    %493 = vmatmul.bf16.gmra.mxu0 %v390
    %v494 = vpop.f32.mrf.mxu0
    %v495 = vadd.f32 0.0, %v494
    %v496 = vpop.f32.mrf.mxu0
    %v497 = vadd.f32 0.0, %v496
    %498 = vmatmul.bf16.gmra.mxu0 %v393
    %v499 = vpop.f32.mrf.mxu0
    %v500 = vadd.f32 0.0, %v499
    %v501 = vpop.f32.mrf.mxu0
    %v502 = vadd.f32 0.0, %v501
    %503 = vmatmul.bf16.gmra.mxu0 %v396
    %v504 = vpop.f32.mrf.mxu0
    %v505 = vadd.f32 0.0, %v504
    %v506 = vpop.f32.mrf.mxu0
    %v507 = vadd.f32 0.0, %v506
    %508 = vmatmul.bf16.gmra.mxu0 %v399
    %v509 = vpop.f32.mrf.mxu0
    %v510 = vadd.f32 0.0, %v509
    %v511 = vpop.f32.mrf.mxu0
    %v512 = vadd.f32 0.0, %v511
    %513 = vmatmul.bf16.gmra.mxu0 %v402
    %v514 = vpop.f32.mrf.mxu0
    %v515 = vadd.f32 0.0, %v514
    %v516 = vpop.f32.mrf.mxu0
    %v517 = vadd.f32 0.0, %v516
    %518 = vmatmul.bf16.gmra.mxu0 %v405
    %v519 = vpop.f32.mrf.mxu0
    %v520 = vadd.f32 0.0, %v519
    %v521 = vpop.f32.mrf.mxu0
    %v522 = vadd.f32 0.0, %v521
    %523 = vmatmul.bf16.gmra.mxu0 %v408
    %v524 = vpop.f32.mrf.mxu0
    %v525 = vadd.f32 0.0, %v524
    %v526 = vpop.f32.mrf.mxu0
    %v527 = vadd.f32 0.0, %v526
    %528 = vmatmul.bf16.gmra.mxu0 %v411
    %v529 = vpop.f32.mrf.mxu0
    %v530 = vadd.f32 0.0, %v529
    %v531 = vpop.f32.mrf.mxu0
    %v532 = vadd.f32 0.0, %v531
    %533 = vmatmul.bf16.gmra.mxu0 %v414
    %v534 = vpop.f32.mrf.mxu0
    %v535 = vadd.f32 0.0, %v534
    %v536 = vpop.f32.mrf.mxu0
    %v537 = vadd.f32 0.0, %v536
    %538 = vmatmul.bf16.gmra.mxu0 %v417
    %v539 = vpop.f32.mrf.mxu0
    %v540 = vadd.f32 0.0, %v539
    %v541 = vpop.f32.mrf.mxu0
    %v542 = vadd.f32 0.0, %v541
    %543 = vmatmul.bf16.gmra.mxu0 %v420
    %v544 = vpop.f32.mrf.mxu0
    %v545 = vadd.f32 0.0, %v544
    %v546 = vpop.f32.mrf.mxu0
    %v547 = vadd.f32 0.0, %v546
    %548 = vmatmul.bf16.gmra.mxu0 %v423
    %v549 = vpop.f32.mrf.mxu0
    %v550 = vadd.f32 0.0, %v549
    %v551 = vpop.f32.mrf.mxu0
    %v552 = vadd.f32 0.0, %v551
    %553 = vmatmul.bf16.gmra.mxu0 %v426
    %v554 = vpop.f32.mrf.mxu0
    %v555 = vadd.f32 0.0, %v554
    %v556 = vpop.f32.mrf.mxu0
    %v557 = vadd.f32 0.0, %v556
    %558 = vmatmul.bf16.gmra.mxu0 %v429
    %v559 = vpop.f32.mrf.mxu0
    %v560 = vadd.f32 0.0, %v559
    %v561 = vpop.f32.mrf.mxu0
    %v562 = vadd.f32 0.0, %v561
    %563 = vmatmul.bf16.gmra.mxu0 %v432
    %v564 = vpop.f32.mrf.mxu0
    %v565 = vadd.f32 0.0, %v564
    %v566 = vpop.f32.mrf.mxu0
    %v567 = vadd.f32 0.0, %v566
    %568 = vmatmul.bf16.gmra.mxu0 %v435
    %v569 = vpop.f32.mrf.mxu0
    %v570 = vadd.f32 0.0, %v569
    %v571 = vpop.f32.mrf.mxu0
    %v572 = vadd.f32 0.0, %v571
    %573 = vmatmul.bf16.gmra.mxu0 %v438
    %v574 = vpop.f32.mrf.mxu0
    %v575 = vadd.f32 0.0, %v574
    %v576 = vpop.f32.mrf.mxu0
    %v577 = vadd.f32 0.0, %v576
    %578 = vmatmul.bf16.gmra.mxu0 %v441
    %v579 = vpop.f32.mrf.mxu0
    %v580 = vadd.f32 0.0, %v579
    %v581 = vpop.f32.mrf.mxu0
    %v582 = vadd.f32 0.0, %v581
    %583 = vmatmul.bf16.gmra.mxu0 %v444
    %v584 = vpop.f32.mrf.mxu0
    %v585 = vadd.f32 0.0, %v584
    %v586 = vpop.f32.mrf.mxu0
    %v587 = vadd.f32 0.0, %v586
    %588 = vmatmul.bf16.gmra.mxu0 %v447
    %v589 = vpop.f32.mrf.mxu0
    %v590 = vadd.f32 0.0, %v589
    %v591 = vpop.f32.mrf.mxu0
    %v592 = vadd.f32 0.0, %v591
    %593 = vmatmul.bf16.gmra.mxu0 %v450
    %v594 = vpop.f32.mrf.mxu0
    %v595 = vadd.f32 0.0, %v594
    %v596 = vpop.f32.mrf.mxu0
    %v597 = vadd.f32 0.0, %v596
    %598 = vmatmul.bf16.gmra.mxu0 %v453
    %v599 = vpop.f32.mrf.mxu0
    %v600 = vadd.f32 0.0, %v599
    %v601 = vpop.f32.mrf.mxu0
    %v602 = vadd.f32 0.0, %v601
    %603 = vmatmul.bf16.gmra.mxu0 %v456
    %v604 = vpop.f32.mrf.mxu0
    %v605 = vadd.f32 0.0, %v604
    %v606 = vpop.f32.mrf.mxu0
    %v607 = vadd.f32 0.0, %v606
    %608 = vmatmul.bf16.gmra.mxu0 %v459
    %v609 = vpop.f32.mrf.mxu0
    %v610 = vadd.f32 0.0, %v609
    %v611 = vpop.f32.mrf.mxu0
    %v612 = vadd.f32 0.0, %v611
    %613 = vmatmul.bf16.gmra.mxu0 %v462
    %v614 = vpop.f32.mrf.mxu0
    %v615 = vadd.f32 0.0, %v614
    %v616 = vpop.f32.mrf.mxu0
    %v617 = vadd.f32 0.0, %v616
    %618 = vmatmul.bf16.gmra.mxu0 %v465
    %v619 = vpop.f32.mrf.mxu0
    %v620 = vadd.f32 0.0, %v619
    %v621 = vpop.f32.mrf.mxu0
    %v622 = vadd.f32 0.0, %v621
    %623 = vmatmul.bf16.gmra.mxu0 %v468
    %v624 = vpop.f32.mrf.mxu0
    %v625 = vadd.f32 0.0, %v624
    %v626 = vpop.f32.mrf.mxu0
    %v627 = vadd.f32 0.0, %v626
    %628 = vmatmul.bf16.gmra.mxu0 %v471
    %v629 = vpop.f32.mrf.mxu0
    %v630 = vadd.f32 0.0, %v629
    %v631 = vpop.f32.mrf.mxu0
    %v632 = vadd.f32 0.0, %v631
    %633 = vmatmul.bf16.gmra.mxu0 %v474
    %v634 = vpop.f32.mrf.mxu0
    %v635 = vadd.f32 0.0, %v634
    %v636 = vpop.f32.mrf.mxu0
    %v637 = vadd.f32 0.0, %v636
    %638 = vmatmul.bf16.gmra.mxu0 %v477
    %v639 = vpop.f32.mrf.mxu0
    %v640 = vadd.f32 0.0, %v639
    %v641 = vpop.f32.mrf.mxu0
    %v642 = vadd.f32 0.0, %v641
    %643 = vmatmul.bf16.gmra.mxu0 %v480
    %v644 = vpop.f32.mrf.mxu0
    %v645 = vadd.f32 0.0, %v644
    %v646 = vpop.f32.mrf.mxu0
    %v647 = vadd.f32 0.0, %v646
    %648 = vmatmul.bf16.gmra.mxu0 %v483
    %v649 = vpop.f32.mrf.mxu0
    %v650 = vadd.f32 0.0, %v649
    %v651 = vpop.f32.mrf.mxu0
    %v652 = vadd.f32 0.0, %v651
    %653 = vdwg.mxu0
    %v654 = vadd.f32 %v84, %v495
    %v655 = vadd.f32 %v85, %v497
    %v656 = vadd.f32 %v86, %v500
    %v657 = vadd.f32 %v87, %v502
    %v658 = vadd.f32 %v88, %v505
    %v659 = vadd.f32 %v89, %v507
    %v660 = vadd.f32 %v90, %v510
    %v661 = vadd.f32 %v91, %v512
    %v662 = vadd.f32 %v92, %v515
    %v663 = vadd.f32 %v93, %v517
    %v664 = vadd.f32 %v94, %v520
    %v665 = vadd.f32 %v95, %v522
    %v666 = vadd.f32 %v96, %v525
    %v667 = vadd.f32 %v97, %v527
    %v668 = vadd.f32 %v98, %v530
    %v669 = vadd.f32 %v99, %v532
    %v670 = vadd.f32 %v100, %v535
    %v671 = vadd.f32 %v101, %v537
    %v672 = vadd.f32 %v102, %v540
    %v673 = vadd.f32 %v103, %v542
    %v674 = vadd.f32 %v104, %v545
    %v675 = vadd.f32 %v105, %v547
    %v676 = vadd.f32 %v106, %v550
    %v677 = vadd.f32 %v107, %v552
    %v678 = vadd.f32 %v108, %v555
    %v679 = vadd.f32 %v109, %v557
    %v680 = vadd.f32 %v110, %v560
    %v681 = vadd.f32 %v111, %v562
    %v682 = vadd.f32 %v112, %v565
    %v683 = vadd.f32 %v113, %v567
    %v684 = vadd.f32 %v114, %v570
    %v685 = vadd.f32 %v115, %v572
    %v686 = vadd.f32 %v116, %v575
    %v687 = vadd.f32 %v117, %v577
    %v688 = vadd.f32 %v118, %v580
    %v689 = vadd.f32 %v119, %v582
    %v690 = vadd.f32 %v120, %v585
    %v691 = vadd.f32 %v121, %v587
    %v692 = vadd.f32 %v122, %v590
    %v693 = vadd.f32 %v123, %v592
    %v694 = vadd.f32 %v124, %v595
    %v695 = vadd.f32 %v125, %v597
    %v696 = vadd.f32 %v126, %v600
    %v697 = vadd.f32 %v127, %v602
    %v698 = vadd.f32 %v128, %v605
    %v699 = vadd.f32 %v129, %v607
    %v700 = vadd.f32 %v130, %v610
    %v701 = vadd.f32 %v131, %v612
    %v702 = vadd.f32 %v132, %v615
    %v703 = vadd.f32 %v133, %v617
    %v704 = vadd.f32 %v134, %v620
    %v705 = vadd.f32 %v135, %v622
    %v706 = vadd.f32 %v136, %v625
    %v707 = vadd.f32 %v137, %v627
    %v708 = vadd.f32 %v138, %v630
    %v709 = vadd.f32 %v139, %v632
    %v710 = vadd.f32 %v140, %v635
    %v711 = vadd.f32 %v141, %v637
    %v712 = vadd.f32 %v142, %v640
    %v713 = vadd.f32 %v143, %v642
    %v714 = vadd.f32 %v144, %v645
    %v715 = vadd.f32 %v145, %v647
    %v716 = vadd.f32 %v146, %v650
    %v717 = vadd.f32 %v147, %v652
    %718 = vst [vmem:[#allocation2] sm:$0xff] %v654
    %719 = vst [vmem:[#allocation2 + $0x8] sm:$0xff] %v655
    %720 = vst [vmem:[#allocation2 + $0x10] sm:$0xff] %v656
    %721 = vst [vmem:[#allocation2 + $0x18] sm:$0xff] %v657
    %722 = vst [vmem:[#allocation2 + $0x20] sm:$0xff] %v658
    %723 = vst [vmem:[#allocation2 + $0x28] sm:$0xff] %v659
    %724 = vst [vmem:[#allocation2 + $0x30] sm:$0xff] %v660
    %725 = vst [vmem:[#allocation2 + $0x38] sm:$0xff] %v661
    %726 = vst [vmem:[#allocation2 + $0x40] sm:$0xff] %v662
    %727 = vst [vmem:[#allocation2 + $0x48] sm:$0xff] %v663
    %728 = vst [vmem:[#allocation2 + $0x50] sm:$0xff] %v664
    %729 = vst [vmem:[#allocation2 + $0x58] sm:$0xff] %v665
    %730 = vst [vmem:[#allocation2 + $0x60] sm:$0xff] %v666
    %731 = vst [vmem:[#allocation2 + $0x68] sm:$0xff] %v667
    %732 = vst [vmem:[#allocation2 + $0x70] sm:$0xff] %v668
    %733 = vst [vmem:[#allocation2 + $0x78] sm:$0xff] %v669
    %734 = vst [vmem:[#allocation2 + $0x80] sm:$0xff] %v670
    %735 = vst [vmem:[#allocation2 + $0x88] sm:$0xff] %v671
    %736 = vst [vmem:[#allocation2 + $0x90] sm:$0xff] %v672
    %737 = vst [vmem:[#allocation2 + $0x98] sm:$0xff] %v673
    %738 = vst [vmem:[#allocation2 + $0xa0] sm:$0xff] %v674
    %739 = vst [vmem:[#allocation2 + $0xa8] sm:$0xff] %v675
    %740 = vst [vmem:[#allocation2 + $0xb0] sm:$0xff] %v676
    %741 = vst [vmem:[#allocation2 + $0xb8] sm:$0xff] %v677
    %742 = vst [vmem:[#allocation2 + $0xc0] sm:$0xff] %v678
    %743 = vst [vmem:[#allocation2 + $0xc8] sm:$0xff] %v679
    %744 = vst [vmem:[#allocation2 + $0xd0] sm:$0xff] %v680
    %745 = vst [vmem:[#allocation2 + $0xd8] sm:$0xff] %v681
    %746 = vst [vmem:[#allocation2 + $0xe0] sm:$0xff] %v682
    %747 = vst [vmem:[#allocation2 + $0xe8] sm:$0xff] %v683
    %748 = vst [vmem:[#allocation2 + $0xf0] sm:$0xff] %v684
    %749 = vst [vmem:[#allocation2 + $0xf8] sm:$0xff] %v685
    %750 = vst [vmem:[#allocation2 + $0x100] sm:$0xff] %v686
    %751 = vst [vmem:[#allocation2 + $0x108] sm:$0xff] %v687
    %752 = vst [vmem:[#allocation2 + $0x110] sm:$0xff] %v688
    %753 = vst [vmem:[#allocation2 + $0x118] sm:$0xff] %v689
    %754 = vst [vmem:[#allocation2 + $0x120] sm:$0xff] %v690
    %755 = vst [vmem:[#allocation2 + $0x128] sm:$0xff] %v691
    %756 = vst [vmem:[#allocation2 + $0x130] sm:$0xff] %v692
    %757 = vst [vmem:[#allocation2 + $0x138] sm:$0xff] %v693
    %758 = vst [vmem:[#allocation2 + $0x140] sm:$0xff] %v694
    %759 = vst [vmem:[#allocation2 + $0x148] sm:$0xff] %v695
    %760 = vst [vmem:[#allocation2 + $0x150] sm:$0xff] %v696
    %761 = vst [vmem:[#allocation2 + $0x158] sm:$0xff] %v697
    %762 = vst [vmem:[#allocation2 + $0x160] sm:$0xff] %v698
    %763 = vst [vmem:[#allocation2 + $0x168] sm:$0xff] %v699
    %764 = vst [vmem:[#allocation2 + $0x170] sm:$0xff] %v700
    %765 = vst [vmem:[#allocation2 + $0x178] sm:$0xff] %v701
    %766 = vst [vmem:[#allocation2 + $0x180] sm:$0xff] %v702
    %767 = vst [vmem:[#allocation2 + $0x188] sm:$0xff] %v703
    %768 = vst [vmem:[#allocation2 + $0x190] sm:$0xff] %v704
    %769 = vst [vmem:[#allocation2 + $0x198] sm:$0xff] %v705
    %770 = vst [vmem:[#allocation2 + $0x1a0] sm:$0xff] %v706
    %771 = vst [vmem:[#allocation2 + $0x1a8] sm:$0xff] %v707
    %772 = vst [vmem:[#allocation2 + $0x1b0] sm:$0xff] %v708
    %773 = vst [vmem:[#allocation2 + $0x1b8] sm:$0xff] %v709
    %774 = vst [vmem:[#allocation2 + $0x1c0] sm:$0xff] %v710
    %775 = vst [vmem:[#allocation2 + $0x1c8] sm:$0xff] %v711
    %776 = vst [vmem:[#allocation2 + $0x1d0] sm:$0xff] %v712
    %777 = vst [vmem:[#allocation2 + $0x1d8] sm:$0xff] %v713
    %778 = vst [vmem:[#allocation2 + $0x1e0] sm:$0xff] %v714
    %779 = vst [vmem:[#allocation2 + $0x1e8] sm:$0xff] %v715
    %780 = vst [vmem:[#allocation2 + $0x1f0] sm:$0xff] %v716
    %781 = vst [vmem:[#allocation2 + $0x1f8] sm:$0xff] %v717
    // Predicated region
    $region18: #{gemm.1} parent=1 // pred_check
      %p782 = pneg %p16
    $region19: #{gemm.1} parent=1 // pred_check_branch
      %784 = sbr.rel (%p782) target = $region21
    $region20: #{gemm.1} parent=1 // pred_region
      %v785 = vld [vmem:[#allocation2] sm:$0xff]
      %v786 = vld [vmem:[#allocation2 + $0x8] sm:$0xff]
      %v787 = vld [vmem:[#allocation2 + $0x10] sm:$0xff]
      %v788 = vld [vmem:[#allocation2 + $0x18] sm:$0xff]
      %v789 = vld [vmem:[#allocation2 + $0x20] sm:$0xff]
      %v790 = vld [vmem:[#allocation2 + $0x28] sm:$0xff]
      %v791 = vld [vmem:[#allocation2 + $0x30] sm:$0xff]
      %v792 = vld [vmem:[#allocation2 + $0x38] sm:$0xff]
      %v793 = vld [vmem:[#allocation2 + $0x40] sm:$0xff]
      %v794 = vld [vmem:[#allocation2 + $0x48] sm:$0xff]
      %v795 = vld [vmem:[#allocation2 + $0x50] sm:$0xff]
      %v796 = vld [vmem:[#allocation2 + $0x58] sm:$0xff]
      %v797 = vld [vmem:[#allocation2 + $0x60] sm:$0xff]
      %v798 = vld [vmem:[#allocation2 + $0x68] sm:$0xff]
      %v799 = vld [vmem:[#allocation2 + $0x70] sm:$0xff]
      %v800 = vld [vmem:[#allocation2 + $0x78] sm:$0xff]
      %v801 = vld [vmem:[#allocation2 + $0x80] sm:$0xff]
      %v802 = vld [vmem:[#allocation2 + $0x88] sm:$0xff]
      %v803 = vld [vmem:[#allocation2 + $0x90] sm:$0xff]
      %v804 = vld [vmem:[#allocation2 + $0x98] sm:$0xff]
      %v805 = vld [vmem:[#allocation2 + $0xa0] sm:$0xff]
      %v806 = vld [vmem:[#allocation2 + $0xa8] sm:$0xff]
      %v807 = vld [vmem:[#allocation2 + $0xb0] sm:$0xff]
      %v808 = vld [vmem:[#allocation2 + $0xb8] sm:$0xff]
      %v809 = vld [vmem:[#allocation2 + $0xc0] sm:$0xff]
      %v810 = vld [vmem:[#allocation2 + $0xc8] sm:$0xff]
      %v811 = vld [vmem:[#allocation2 + $0xd0] sm:$0xff]
      %v812 = vld [vmem:[#allocation2 + $0xd8] sm:$0xff]
      %v813 = vld [vmem:[#allocation2 + $0xe0] sm:$0xff]
      %v814 = vld [vmem:[#allocation2 + $0xe8] sm:$0xff]
      %v815 = vld [vmem:[#allocation2 + $0xf0] sm:$0xff]
      %v816 = vld [vmem:[#allocation2 + $0xf8] sm:$0xff]
      %v817 = vld [vmem:[#allocation2 + $0x100] sm:$0xff]
      %v818 = vld [vmem:[#allocation2 + $0x108] sm:$0xff]
      %v819 = vld [vmem:[#allocation2 + $0x110] sm:$0xff]
      %v820 = vld [vmem:[#allocation2 + $0x118] sm:$0xff]
      %v821 = vld [vmem:[#allocation2 + $0x120] sm:$0xff]
      %v822 = vld [vmem:[#allocation2 + $0x128] sm:$0xff]
      %v823 = vld [vmem:[#allocation2 + $0x130] sm:$0xff]
      %v824 = vld [vmem:[#allocation2 + $0x138] sm:$0xff]
      %v825 = vld [vmem:[#allocation2 + $0x140] sm:$0xff]
      %v826 = vld [vmem:[#allocation2 + $0x148] sm:$0xff]
      %v827 = vld [vmem:[#allocation2 + $0x150] sm:$0xff]
      %v828 = vld [vmem:[#allocation2 + $0x158] sm:$0xff]
      %v829 = vld [vmem:[#allocation2 + $0x160] sm:$0xff]
      %v830 = vld [vmem:[#allocation2 + $0x168] sm:$0xff]
      %v831 = vld [vmem:[#allocation2 + $0x170] sm:$0xff]
      %v832 = vld [vmem:[#allocation2 + $0x178] sm:$0xff]
      %v833 = vld [vmem:[#allocation2 + $0x180] sm:$0xff]
      %v834 = vld [vmem:[#allocation2 + $0x188] sm:$0xff]
      %v835 = vld [vmem:[#allocation2 + $0x190] sm:$0xff]
      %v836 = vld [vmem:[#allocation2 + $0x198] sm:$0xff]
      %v837 = vld [vmem:[#allocation2 + $0x1a0] sm:$0xff]
      %v838 = vld [vmem:[#allocation2 + $0x1a8] sm:$0xff]
      %v839 = vld [vmem:[#allocation2 + $0x1b0] sm:$0xff]
      %v840 = vld [vmem:[#allocation2 + $0x1b8] sm:$0xff]
      %v841 = vld [vmem:[#allocation2 + $0x1c0] sm:$0xff]
      %v842 = vld [vmem:[#allocation2 + $0x1c8] sm:$0xff]
      %v843 = vld [vmem:[#allocation2 + $0x1d0] sm:$0xff]
      %v844 = vld [vmem:[#allocation2 + $0x1d8] sm:$0xff]
      %v845 = vld [vmem:[#allocation2 + $0x1e0] sm:$0xff]
      %v846 = vld [vmem:[#allocation2 + $0x1e8] sm:$0xff]
      %v847 = vld [vmem:[#allocation2 + $0x1f0] sm:$0xff]
      %v848 = vld [vmem:[#allocation2 + $0x1f8] sm:$0xff]
      %v849 = vld [vmem:[%s2] sm:$0x1]
      %v851 = vperm.slane %v849, 0
      %v853 = vadd.f32 %v785, %v851
      %v854 = vadd.f32 %v786, %v851
      %v855 = vadd.f32 %v787, %v851
      %v856 = vadd.f32 %v788, %v851
      %v857 = vadd.f32 %v789, %v851
      %v858 = vadd.f32 %v790, %v851
      %v859 = vadd.f32 %v791, %v851
      %v860 = vadd.f32 %v792, %v851
      %v861 = vadd.f32 %v793, %v851
      %v862 = vadd.f32 %v794, %v851
      %v863 = vadd.f32 %v795, %v851
      %v864 = vadd.f32 %v796, %v851
      %v865 = vadd.f32 %v797, %v851
      %v866 = vadd.f32 %v798, %v851
      %v867 = vadd.f32 %v799, %v851
      %v868 = vadd.f32 %v800, %v851
      %v869 = vadd.f32 %v801, %v851
      %v870 = vadd.f32 %v802, %v851
      %v871 = vadd.f32 %v803, %v851
      %v872 = vadd.f32 %v804, %v851
      %v873 = vadd.f32 %v805, %v851
      %v874 = vadd.f32 %v806, %v851
      %v875 = vadd.f32 %v807, %v851
      %v876 = vadd.f32 %v808, %v851
      %v877 = vadd.f32 %v809, %v851
      %v878 = vadd.f32 %v810, %v851
      %v879 = vadd.f32 %v811, %v851
      %v880 = vadd.f32 %v812, %v851
      %v881 = vadd.f32 %v813, %v851
      %v882 = vadd.f32 %v814, %v851
      %v883 = vadd.f32 %v815, %v851
      %v884 = vadd.f32 %v816, %v851
      %v885 = vadd.f32 %v817, %v851
      %v886 = vadd.f32 %v818, %v851
      %v887 = vadd.f32 %v819, %v851
      %v888 = vadd.f32 %v820, %v851
      %v889 = vadd.f32 %v821, %v851
      %v890 = vadd.f32 %v822, %v851
      %v891 = vadd.f32 %v823, %v851
      %v892 = vadd.f32 %v824, %v851
      %v893 = vadd.f32 %v825, %v851
      %v894 = vadd.f32 %v826, %v851
      %v895 = vadd.f32 %v827, %v851
      %v896 = vadd.f32 %v828, %v851
      %v897 = vadd.f32 %v829, %v851
      %v898 = vadd.f32 %v830, %v851
      %v899 = vadd.f32 %v831, %v851
      %v900 = vadd.f32 %v832, %v851
      %v901 = vadd.f32 %v833, %v851
      %v902 = vadd.f32 %v834, %v851
      %v903 = vadd.f32 %v835, %v851
      %v904 = vadd.f32 %v836, %v851
      %v905 = vadd.f32 %v837, %v851
      %v906 = vadd.f32 %v838, %v851
      %v907 = vadd.f32 %v839, %v851
      %v908 = vadd.f32 %v840, %v851
      %v909 = vadd.f32 %v841, %v851
      %v910 = vadd.f32 %v842, %v851
      %v911 = vadd.f32 %v843, %v851
      %v912 = vadd.f32 %v844, %v851
      %v913 = vadd.f32 %v845, %v851
      %v914 = vadd.f32 %v846, %v851
      %v915 = vadd.f32 %v847, %v851
      %v916 = vadd.f32 %v848, %v851
      %v917 = vsub.f32 0.0, %v853
      %v918 = vsub.f32 0.0, %v854
      %v919 = vsub.f32 0.0, %v855
      %v920 = vsub.f32 0.0, %v856
      %v921 = vsub.f32 0.0, %v857
      %v922 = vsub.f32 0.0, %v858
      %v923 = vsub.f32 0.0, %v859
      %v924 = vsub.f32 0.0, %v860
      %v925 = vsub.f32 0.0, %v861
      %v926 = vsub.f32 0.0, %v862
      %v927 = vsub.f32 0.0, %v863
      %v928 = vsub.f32 0.0, %v864
      %v929 = vsub.f32 0.0, %v865
      %v930 = vsub.f32 0.0, %v866
      %v931 = vsub.f32 0.0, %v867
      %v932 = vsub.f32 0.0, %v868
      %v933 = vsub.f32 0.0, %v869
      %v934 = vsub.f32 0.0, %v870
      %v935 = vsub.f32 0.0, %v871
      %v936 = vsub.f32 0.0, %v872
      %v937 = vsub.f32 0.0, %v873
      %v938 = vsub.f32 0.0, %v874
      %v939 = vsub.f32 0.0, %v875
      %v940 = vsub.f32 0.0, %v876
      %v941 = vsub.f32 0.0, %v877
      %v942 = vsub.f32 0.0, %v878
      %v943 = vsub.f32 0.0, %v879
      %v944 = vsub.f32 0.0, %v880
      %v945 = vsub.f32 0.0, %v881
      %v946 = vsub.f32 0.0, %v882
      %v947 = vsub.f32 0.0, %v883
      %v948 = vsub.f32 0.0, %v884
      %v949 = vsub.f32 0.0, %v885
      %v950 = vsub.f32 0.0, %v886
      %v951 = vsub.f32 0.0, %v887
      %v952 = vsub.f32 0.0, %v888
      %v953 = vsub.f32 0.0, %v889
      %v954 = vsub.f32 0.0, %v890
      %v955 = vsub.f32 0.0, %v891
      %v956 = vsub.f32 0.0, %v892
      %v957 = vsub.f32 0.0, %v893
      %v958 = vsub.f32 0.0, %v894
      %v959 = vsub.f32 0.0, %v895
      %v960 = vsub.f32 0.0, %v896
      %v961 = vsub.f32 0.0, %v897
      %v962 = vsub.f32 0.0, %v898
      %v963 = vsub.f32 0.0, %v899
      %v964 = vsub.f32 0.0, %v900
      %v965 = vsub.f32 0.0, %v901
      %v966 = vsub.f32 0.0, %v902
      %v967 = vsub.f32 0.0, %v903
      %v968 = vsub.f32 0.0, %v904
      %v969 = vsub.f32 0.0, %v905
      %v970 = vsub.f32 0.0, %v906
      %v971 = vsub.f32 0.0, %v907
      %v972 = vsub.f32 0.0, %v908
      %v973 = vsub.f32 0.0, %v909
      %v974 = vsub.f32 0.0, %v910
      %v975 = vsub.f32 0.0, %v911
      %v976 = vsub.f32 0.0, %v912
      %v977 = vsub.f32 0.0, %v913
      %v978 = vsub.f32 0.0, %v914
      %v979 = vsub.f32 0.0, %v915
      %v980 = vsub.f32 0.0, %v916
      %v981 = vmul.f32 %v917, 1.442695
      %v982 = vpow.pop %v981
      %v983 = vmul.f32 %v918, 1.442695
      %v984 = vpow.pop %v983
      %v985 = vmul.f32 %v919, 1.442695
      %v986 = vpow.pop %v985
      %v987 = vmul.f32 %v920, 1.442695
      %v988 = vpow.pop %v987
      %v989 = vmul.f32 %v921, 1.442695
      %v990 = vpow.pop %v989
      %v991 = vmul.f32 %v922, 1.442695
      %v992 = vpow.pop %v991
      %v993 = vmul.f32 %v923, 1.442695
      %v994 = vpow.pop %v993
      %v995 = vmul.f32 %v924, 1.442695
      %v996 = vpow.pop %v995
      %v997 = vmul.f32 %v925, 1.442695
      %v998 = vpow.pop %v997
      %v999 = vmul.f32 %v926, 1.442695
      %v1000 = vpow.pop %v999
      %v1001 = vmul.f32 %v927, 1.442695
      %v1002 = vpow.pop %v1001
      %v1003 = vmul.f32 %v928, 1.442695
      %v1004 = vpow.pop %v1003
      %v1005 = vmul.f32 %v929, 1.442695
      %v1006 = vpow.pop %v1005
      %v1007 = vmul.f32 %v930, 1.442695
      %v1008 = vpow.pop %v1007
      %v1009 = vmul.f32 %v931, 1.442695
      %v1010 = vpow.pop %v1009
      %v1011 = vmul.f32 %v932, 1.442695
      %v1012 = vpow.pop %v1011
      %v1013 = vmul.f32 %v933, 1.442695
      %v1014 = vpow.pop %v1013
      %v1015 = vmul.f32 %v934, 1.442695
      %v1016 = vpow.pop %v1015
      %v1017 = vmul.f32 %v935, 1.442695
      %v1018 = vpow.pop %v1017
      %v1019 = vmul.f32 %v936, 1.442695
      %v1020 = vpow.pop %v1019
      %v1021 = vmul.f32 %v937, 1.442695
      %v1022 = vpow.pop %v1021
      %v1023 = vmul.f32 %v938, 1.442695
      %v1024 = vpow.pop %v1023
      %v1025 = vmul.f32 %v939, 1.442695
      %v1026 = vpow.pop %v1025
      %v1027 = vmul.f32 %v940, 1.442695
      %v1028 = vpow.pop %v1027
      %v1029 = vmul.f32 %v941, 1.442695
      %v1030 = vpow.pop %v1029
      %v1031 = vmul.f32 %v942, 1.442695
      %v1032 = vpow.pop %v1031
      %v1033 = vmul.f32 %v943, 1.442695
      %v1034 = vpow.pop %v1033
      %v1035 = vmul.f32 %v944, 1.442695
      %v1036 = vpow.pop %v1035
      %v1037 = vmul.f32 %v945, 1.442695
      %v1038 = vpow.pop %v1037
      %v1039 = vmul.f32 %v946, 1.442695
      %v1040 = vpow.pop %v1039
      %v1041 = vmul.f32 %v947, 1.442695
      %v1042 = vpow.pop %v1041
      %v1043 = vmul.f32 %v948, 1.442695
      %v1044 = vpow.pop %v1043
      %v1045 = vmul.f32 %v949, 1.442695
      %v1046 = vpow.pop %v1045
      %v1047 = vmul.f32 %v950, 1.442695
      %v1048 = vpow.pop %v1047
      %v1049 = vmul.f32 %v951, 1.442695
      %v1050 = vpow.pop %v1049
      %v1051 = vmul.f32 %v952, 1.442695
      %v1052 = vpow.pop %v1051
      %v1053 = vmul.f32 %v953, 1.442695
      %v1054 = vpow.pop %v1053
      %v1055 = vmul.f32 %v954, 1.442695
      %v1056 = vpow.pop %v1055
      %v1057 = vmul.f32 %v955, 1.442695
      %v1058 = vpow.pop %v1057
      %v1059 = vmul.f32 %v956, 1.442695
      %v1060 = vpow.pop %v1059
      %v1061 = vmul.f32 %v957, 1.442695
      %v1062 = vpow.pop %v1061
      %v1063 = vmul.f32 %v958, 1.442695
      %v1064 = vpow.pop %v1063
      %v1065 = vmul.f32 %v959, 1.442695
      %v1066 = vpow.pop %v1065
      %v1067 = vmul.f32 %v960, 1.442695
      %v1068 = vpow.pop %v1067
      %v1069 = vmul.f32 %v961, 1.442695
      %v1070 = vpow.pop %v1069
      %v1071 = vmul.f32 %v962, 1.442695
      %v1072 = vpow.pop %v1071
      %v1073 = vmul.f32 %v963, 1.442695
      %v1074 = vpow.pop %v1073
      %v1075 = vmul.f32 %v964, 1.442695
      %v1076 = vpow.pop %v1075
      %v1077 = vmul.f32 %v965, 1.442695
      %v1078 = vpow.pop %v1077
      %v1079 = vmul.f32 %v966, 1.442695
      %v1080 = vpow.pop %v1079
      %v1081 = vmul.f32 %v967, 1.442695
      %v1082 = vpow.pop %v1081
      %v1083 = vmul.f32 %v968, 1.442695
      %v1084 = vpow.pop %v1083
      %v1085 = vmul.f32 %v969, 1.442695
      %v1086 = vpow.pop %v1085
      %v1087 = vmul.f32 %v970, 1.442695
      %v1088 = vpow.pop %v1087
      %v1089 = vmul.f32 %v971, 1.442695
      %v1090 = vpow.pop %v1089
      %v1091 = vmul.f32 %v972, 1.442695
      %v1092 = vpow.pop %v1091
      %v1093 = vmul.f32 %v973, 1.442695
      %v1094 = vpow.pop %v1093
      %v1095 = vmul.f32 %v974, 1.442695
      %v1096 = vpow.pop %v1095
      %v1097 = vmul.f32 %v975, 1.442695
      %v1098 = vpow.pop %v1097
      %v1099 = vmul.f32 %v976, 1.442695
      %v1100 = vpow.pop %v1099
      %v1101 = vmul.f32 %v977, 1.442695
      %v1102 = vpow.pop %v1101
      %v1103 = vmul.f32 %v978, 1.442695
      %v1104 = vpow.pop %v1103
      %v1105 = vmul.f32 %v979, 1.442695
      %v1106 = vpow.pop %v1105
      %v1107 = vmul.f32 %v980, 1.442695
      %v1108 = vpow.pop %v1107
      %v1109 = vadd.f32 %v982, 1.0
      %v1110 = vadd.f32 %v984, 1.0
      %v1111 = vadd.f32 %v986, 1.0
      %v1112 = vadd.f32 %v988, 1.0
      %v1113 = vadd.f32 %v990, 1.0
      %v1114 = vadd.f32 %v992, 1.0
      %v1115 = vadd.f32 %v994, 1.0
      %v1116 = vadd.f32 %v996, 1.0
      %v1117 = vadd.f32 %v998, 1.0
      %v1118 = vadd.f32 %v1000, 1.0
      %v1119 = vadd.f32 %v1002, 1.0
      %v1120 = vadd.f32 %v1004, 1.0
      %v1121 = vadd.f32 %v1006, 1.0
      %v1122 = vadd.f32 %v1008, 1.0
      %v1123 = vadd.f32 %v1010, 1.0
      %v1124 = vadd.f32 %v1012, 1.0
      %v1125 = vadd.f32 %v1014, 1.0
      %v1126 = vadd.f32 %v1016, 1.0
      %v1127 = vadd.f32 %v1018, 1.0
      %v1128 = vadd.f32 %v1020, 1.0
      %v1129 = vadd.f32 %v1022, 1.0
      %v1130 = vadd.f32 %v1024, 1.0
      %v1131 = vadd.f32 %v1026, 1.0
      %v1132 = vadd.f32 %v1028, 1.0
      %v1133 = vadd.f32 %v1030, 1.0
      %v1134 = vadd.f32 %v1032, 1.0
      %v1135 = vadd.f32 %v1034, 1.0
      %v1136 = vadd.f32 %v1036, 1.0
      %v1137 = vadd.f32 %v1038, 1.0
      %v1138 = vadd.f32 %v1040, 1.0
      %v1139 = vadd.f32 %v1042, 1.0
      %v1140 = vadd.f32 %v1044, 1.0
      %v1141 = vadd.f32 %v1046, 1.0
      %v1142 = vadd.f32 %v1048, 1.0
      %v1143 = vadd.f32 %v1050, 1.0
      %v1144 = vadd.f32 %v1052, 1.0
      %v1145 = vadd.f32 %v1054, 1.0
      %v1146 = vadd.f32 %v1056, 1.0
      %v1147 = vadd.f32 %v1058, 1.0
      %v1148 = vadd.f32 %v1060, 1.0
      %v1149 = vadd.f32 %v1062, 1.0
      %v1150 = vadd.f32 %v1064, 1.0
      %v1151 = vadd.f32 %v1066, 1.0
      %v1152 = vadd.f32 %v1068, 1.0
      %v1153 = vadd.f32 %v1070, 1.0
      %v1154 = vadd.f32 %v1072, 1.0
      %v1155 = vadd.f32 %v1074, 1.0
      %v1156 = vadd.f32 %v1076, 1.0
      %v1157 = vadd.f32 %v1078, 1.0
      %v1158 = vadd.f32 %v1080, 1.0
      %v1159 = vadd.f32 %v1082, 1.0
      %v1160 = vadd.f32 %v1084, 1.0
      %v1161 = vadd.f32 %v1086, 1.0
      %v1162 = vadd.f32 %v1088, 1.0
      %v1163 = vadd.f32 %v1090, 1.0
      %v1164 = vadd.f32 %v1092, 1.0
      %v1165 = vadd.f32 %v1094, 1.0
      %v1166 = vadd.f32 %v1096, 1.0
      %v1167 = vadd.f32 %v1098, 1.0
      %v1168 = vadd.f32 %v1100, 1.0
      %v1169 = vadd.f32 %v1102, 1.0
      %v1170 = vadd.f32 %v1104, 1.0
      %v1171 = vadd.f32 %v1106, 1.0
      %v1172 = vadd.f32 %v1108, 1.0
      %v1173 = vrcp.pop %v1109
      %v1174 = vrcp.pop %v1110
      %v1175 = vrcp.pop %v1111
      %v1176 = vrcp.pop %v1112
      %v1177 = vrcp.pop %v1113
      %v1178 = vrcp.pop %v1114
      %v1179 = vrcp.pop %v1115
      %v1180 = vrcp.pop %v1116
      %v1181 = vrcp.pop %v1117
      %v1182 = vrcp.pop %v1118
      %v1183 = vrcp.pop %v1119
      %v1184 = vrcp.pop %v1120
      %v1185 = vrcp.pop %v1121
      %v1186 = vrcp.pop %v1122
      %v1187 = vrcp.pop %v1123
      %v1188 = vrcp.pop %v1124
      %v1189 = vrcp.pop %v1125
      %v1190 = vrcp.pop %v1126
      %v1191 = vrcp.pop %v1127
      %v1192 = vrcp.pop %v1128
      %v1193 = vrcp.pop %v1129
      %v1194 = vrcp.pop %v1130
      %v1195 = vrcp.pop %v1131
      %v1196 = vrcp.pop %v1132
      %v1197 = vrcp.pop %v1133
      %v1198 = vrcp.pop %v1134
      %v1199 = vrcp.pop %v1135
      %v1200 = vrcp.pop %v1136
      %v1201 = vrcp.pop %v1137
      %v1202 = vrcp.pop %v1138
      %v1203 = vrcp.pop %v1139
      %v1204 = vrcp.pop %v1140
      %v1205 = vrcp.pop %v1141
      %v1206 = vrcp.pop %v1142
      %v1207 = vrcp.pop %v1143
      %v1208 = vrcp.pop %v1144
      %v1209 = vrcp.pop %v1145
      %v1210 = vrcp.pop %v1146
      %v1211 = vrcp.pop %v1147
      %v1212 = vrcp.pop %v1148
      %v1213 = vrcp.pop %v1149
      %v1214 = vrcp.pop %v1150
      %v1215 = vrcp.pop %v1151
      %v1216 = vrcp.pop %v1152
      %v1217 = vrcp.pop %v1153
      %v1218 = vrcp.pop %v1154
      %v1219 = vrcp.pop %v1155
      %v1220 = vrcp.pop %v1156
      %v1221 = vrcp.pop %v1157
      %v1222 = vrcp.pop %v1158
      %v1223 = vrcp.pop %v1159
      %v1224 = vrcp.pop %v1160
      %v1225 = vrcp.pop %v1161
      %v1226 = vrcp.pop %v1162
      %v1227 = vrcp.pop %v1163
      %v1228 = vrcp.pop %v1164
      %v1229 = vrcp.pop %v1165
      %v1230 = vrcp.pop %v1166
      %v1231 = vrcp.pop %v1167
      %v1232 = vrcp.pop %v1168
      %v1233 = vrcp.pop %v1169
      %v1234 = vrcp.pop %v1170
      %v1235 = vrcp.pop %v1171
      %v1236 = vrcp.pop %v1172
      %v1237 = vmul.f32 %v853, %v1173
      %v1238 = vmul.f32 %v854, %v1174
      %v1239 = vmul.f32 %v855, %v1175
      %v1240 = vmul.f32 %v856, %v1176
      %v1241 = vmul.f32 %v857, %v1177
      %v1242 = vmul.f32 %v858, %v1178
      %v1243 = vmul.f32 %v859, %v1179
      %v1244 = vmul.f32 %v860, %v1180
      %v1245 = vmul.f32 %v861, %v1181
      %v1246 = vmul.f32 %v862, %v1182
      %v1247 = vmul.f32 %v863, %v1183
      %v1248 = vmul.f32 %v864, %v1184
      %v1249 = vmul.f32 %v865, %v1185
      %v1250 = vmul.f32 %v866, %v1186
      %v1251 = vmul.f32 %v867, %v1187
      %v1252 = vmul.f32 %v868, %v1188
      %v1253 = vmul.f32 %v869, %v1189
      %v1254 = vmul.f32 %v870, %v1190
      %v1255 = vmul.f32 %v871, %v1191
      %v1256 = vmul.f32 %v872, %v1192
      %v1257 = vmul.f32 %v873, %v1193
      %v1258 = vmul.f32 %v874, %v1194
      %v1259 = vmul.f32 %v875, %v1195
      %v1260 = vmul.f32 %v876, %v1196
      %v1261 = vmul.f32 %v877, %v1197
      %v1262 = vmul.f32 %v878, %v1198
      %v1263 = vmul.f32 %v879, %v1199
      %v1264 = vmul.f32 %v880, %v1200
      %v1265 = vmul.f32 %v881, %v1201
      %v1266 = vmul.f32 %v882, %v1202
      %v1267 = vmul.f32 %v883, %v1203
      %v1268 = vmul.f32 %v884, %v1204
      %v1269 = vmul.f32 %v885, %v1205
      %v1270 = vmul.f32 %v886, %v1206
      %v1271 = vmul.f32 %v887, %v1207
      %v1272 = vmul.f32 %v888, %v1208
      %v1273 = vmul.f32 %v889, %v1209
      %v1274 = vmul.f32 %v890, %v1210
      %v1275 = vmul.f32 %v891, %v1211
      %v1276 = vmul.f32 %v892, %v1212
      %v1277 = vmul.f32 %v893, %v1213
      %v1278 = vmul.f32 %v894, %v1214
      %v1279 = vmul.f32 %v895, %v1215
      %v1280 = vmul.f32 %v896, %v1216
      %v1281 = vmul.f32 %v897, %v1217
      %v1282 = vmul.f32 %v898, %v1218
      %v1283 = vmul.f32 %v899, %v1219
      %v1284 = vmul.f32 %v900, %v1220
      %v1285 = vmul.f32 %v901, %v1221
      %v1286 = vmul.f32 %v902, %v1222
      %v1287 = vmul.f32 %v903, %v1223
      %v1288 = vmul.f32 %v904, %v1224
      %v1289 = vmul.f32 %v905, %v1225
      %v1290 = vmul.f32 %v906, %v1226
      %v1291 = vmul.f32 %v907, %v1227
      %v1292 = vmul.f32 %v908, %v1228
      %v1293 = vmul.f32 %v909, %v1229
      %v1294 = vmul.f32 %v910, %v1230
      %v1295 = vmul.f32 %v911, %v1231
      %v1296 = vmul.f32 %v912, %v1232
      %v1297 = vmul.f32 %v913, %v1233
      %v1298 = vmul.f32 %v914, %v1234
      %v1299 = vmul.f32 %v915, %v1235
      %v1300 = vmul.f32 %v916, %v1236
      %v1301 = vpack.c.bf16 %v1237, %v1237
      %v1302 = vpack.c.bf16 %v1238, %v1238
      %v1303 = vpack.c.bf16 %v1239, %v1239
      %v1304 = vpack.c.bf16 %v1240, %v1240
      %v1305 = vpack.c.bf16 %v1241, %v1241
      %v1306 = vpack.c.bf16 %v1242, %v1242
      %v1307 = vpack.c.bf16 %v1243, %v1243
      %v1308 = vpack.c.bf16 %v1244, %v1244
      %v1309 = vpack.c.bf16 %v1245, %v1245
      %v1310 = vpack.c.bf16 %v1246, %v1246
      %v1311 = vpack.c.bf16 %v1247, %v1247
      %v1312 = vpack.c.bf16 %v1248, %v1248
      %v1313 = vpack.c.bf16 %v1249, %v1249
      %v1314 = vpack.c.bf16 %v1250, %v1250
      %v1315 = vpack.c.bf16 %v1251, %v1251
      %v1316 = vpack.c.bf16 %v1252, %v1252
      %v1317 = vpack.c.bf16 %v1253, %v1253
      %v1318 = vpack.c.bf16 %v1254, %v1254
      %v1319 = vpack.c.bf16 %v1255, %v1255
      %v1320 = vpack.c.bf16 %v1256, %v1256
      %v1321 = vpack.c.bf16 %v1257, %v1257
      %v1322 = vpack.c.bf16 %v1258, %v1258
      %v1323 = vpack.c.bf16 %v1259, %v1259
      %v1324 = vpack.c.bf16 %v1260, %v1260
      %v1325 = vpack.c.bf16 %v1261, %v1261
      %v1326 = vpack.c.bf16 %v1262, %v1262
      %v1327 = vpack.c.bf16 %v1263, %v1263
      %v1328 = vpack.c.bf16 %v1264, %v1264
      %v1329 = vpack.c.bf16 %v1265, %v1265
      %v1330 = vpack.c.bf16 %v1266, %v1266
      %v1331 = vpack.c.bf16 %v1267, %v1267
      %v1332 = vpack.c.bf16 %v1268, %v1268
      %v1333 = vpack.c.bf16 %v1269, %v1269
      %v1334 = vpack.c.bf16 %v1270, %v1270
      %v1335 = vpack.c.bf16 %v1271, %v1271
      %v1336 = vpack.c.bf16 %v1272, %v1272
      %v1337 = vpack.c.bf16 %v1273, %v1273
      %v1338 = vpack.c.bf16 %v1274, %v1274
      %v1339 = vpack.c.bf16 %v1275, %v1275
      %v1340 = vpack.c.bf16 %v1276, %v1276
      %v1341 = vpack.c.bf16 %v1277, %v1277
      %v1342 = vpack.c.bf16 %v1278, %v1278
      %v1343 = vpack.c.bf16 %v1279, %v1279
      %v1344 = vpack.c.bf16 %v1280, %v1280
      %v1345 = vpack.c.bf16 %v1281, %v1281
      %v1346 = vpack.c.bf16 %v1282, %v1282
      %v1347 = vpack.c.bf16 %v1283, %v1283
      %v1348 = vpack.c.bf16 %v1284, %v1284
      %v1349 = vpack.c.bf16 %v1285, %v1285
      %v1350 = vpack.c.bf16 %v1286, %v1286
      %v1351 = vpack.c.bf16 %v1287, %v1287
      %v1352 = vpack.c.bf16 %v1288, %v1288
      %v1353 = vpack.c.bf16 %v1289, %v1289
      %v1354 = vpack.c.bf16 %v1290, %v1290
      %v1355 = vpack.c.bf16 %v1291, %v1291
      %v1356 = vpack.c.bf16 %v1292, %v1292
      %v1357 = vpack.c.bf16 %v1293, %v1293
      %v1358 = vpack.c.bf16 %v1294, %v1294
      %v1359 = vpack.c.bf16 %v1295, %v1295
      %v1360 = vpack.c.bf16 %v1296, %v1296
      %v1361 = vpack.c.bf16 %v1297, %v1297
      %v1362 = vpack.c.bf16 %v1298, %v1298
      %v1363 = vpack.c.bf16 %v1299, %v1299
      %v1364 = vpack.c.bf16 %v1300, %v1300
      %1365 = vst [vmem:[#allocation3] sm:$0xf] %v1301
      %1366 = vst [vmem:[#allocation3 + $0x4] sm:$0xf] %v1302
      %1367 = vst [vmem:[#allocation3 + $0x8] sm:$0xf] %v1303
      %1368 = vst [vmem:[#allocation3 + $0xc] sm:$0xf] %v1304
      %1369 = vst [vmem:[#allocation3 + $0x10] sm:$0xf] %v1305
      %1370 = vst [vmem:[#allocation3 + $0x14] sm:$0xf] %v1306
      %1371 = vst [vmem:[#allocation3 + $0x18] sm:$0xf] %v1307
      %1372 = vst [vmem:[#allocation3 + $0x1c] sm:$0xf] %v1308
      %1373 = vst [vmem:[#allocation3 + $0x20] sm:$0xf] %v1309
      %1374 = vst [vmem:[#allocation3 + $0x24] sm:$0xf] %v1310
      %1375 = vst [vmem:[#allocation3 + $0x28] sm:$0xf] %v1311
      %1376 = vst [vmem:[#allocation3 + $0x2c] sm:$0xf] %v1312
      %1377 = vst [vmem:[#allocation3 + $0x30] sm:$0xf] %v1313
      %1378 = vst [vmem:[#allocation3 + $0x34] sm:$0xf] %v1314
      %1379 = vst [vmem:[#allocation3 + $0x38] sm:$0xf] %v1315
      %1380 = vst [vmem:[#allocation3 + $0x3c] sm:$0xf] %v1316
      %1381 = vst [vmem:[#allocation3 + $0x40] sm:$0xf] %v1317
      %1382 = vst [vmem:[#allocation3 + $0x44] sm:$0xf] %v1318
      %1383 = vst [vmem:[#allocation3 + $0x48] sm:$0xf] %v1319
      %1384 = vst [vmem:[#allocation3 + $0x4c] sm:$0xf] %v1320
      %1385 = vst [vmem:[#allocation3 + $0x50] sm:$0xf] %v1321
      %1386 = vst [vmem:[#allocation3 + $0x54] sm:$0xf] %v1322
      %1387 = vst [vmem:[#allocation3 + $0x58] sm:$0xf] %v1323
      %1388 = vst [vmem:[#allocation3 + $0x5c] sm:$0xf] %v1324
      %1389 = vst [vmem:[#allocation3 + $0x60] sm:$0xf] %v1325
      %1390 = vst [vmem:[#allocation3 + $0x64] sm:$0xf] %v1326
      %1391 = vst [vmem:[#allocation3 + $0x68] sm:$0xf] %v1327
      %1392 = vst [vmem:[#allocation3 + $0x6c] sm:$0xf] %v1328
      %1393 = vst [vmem:[#allocation3 + $0x70] sm:$0xf] %v1329
      %1394 = vst [vmem:[#allocation3 + $0x74] sm:$0xf] %v1330
      %1395 = vst [vmem:[#allocation3 + $0x78] sm:$0xf] %v1331
      %1396 = vst [vmem:[#allocation3 + $0x7c] sm:$0xf] %v1332
      %1397 = vst [vmem:[#allocation3 + $0x80] sm:$0xf] %v1333
      %1398 = vst [vmem:[#allocation3 + $0x84] sm:$0xf] %v1334
      %1399 = vst [vmem:[#allocation3 + $0x88] sm:$0xf] %v1335
      %1400 = vst [vmem:[#allocation3 + $0x8c] sm:$0xf] %v1336
      %1401 = vst [vmem:[#allocation3 + $0x90] sm:$0xf] %v1337
      %1402 = vst [vmem:[#allocation3 + $0x94] sm:$0xf] %v1338
      %1403 = vst [vmem:[#allocation3 + $0x98] sm:$0xf] %v1339
      %1404 = vst [vmem:[#allocation3 + $0x9c] sm:$0xf] %v1340
      %1405 = vst [vmem:[#allocation3 + $0xa0] sm:$0xf] %v1341
      %1406 = vst [vmem:[#allocation3 + $0xa4] sm:$0xf] %v1342
      %1407 = vst [vmem:[#allocation3 + $0xa8] sm:$0xf] %v1343
      %1408 = vst [vmem:[#allocation3 + $0xac] sm:$0xf] %v1344
      %1409 = vst [vmem:[#allocation3 + $0xb0] sm:$0xf] %v1345
      %1410 = vst [vmem:[#allocation3 + $0xb4] sm:$0xf] %v1346
      %1411 = vst [vmem:[#allocation3 + $0xb8] sm:$0xf] %v1347
      %1412 = vst [vmem:[#allocation3 + $0xbc] sm:$0xf] %v1348
      %1413 = vst [vmem:[#allocation3 + $0xc0] sm:$0xf] %v1349
      %1414 = vst [vmem:[#allocation3 + $0xc4] sm:$0xf] %v1350
      %1415 = vst [vmem:[#allocation3 + $0xc8] sm:$0xf] %v1351
      %1416 = vst [vmem:[#allocation3 + $0xcc] sm:$0xf] %v1352
      %1417 = vst [vmem:[#allocation3 + $0xd0] sm:$0xf] %v1353
      %1418 = vst [vmem:[#allocation3 + $0xd4] sm:$0xf] %v1354
      %1419 = vst [vmem:[#allocation3 + $0xd8] sm:$0xf] %v1355
      %1420 = vst [vmem:[#allocation3 + $0xdc] sm:$0xf] %v1356
      %1421 = vst [vmem:[#allocation3 + $0xe0] sm:$0xf] %v1357
      %1422 = vst [vmem:[#allocation3 + $0xe4] sm:$0xf] %v1358
      %1423 = vst [vmem:[#allocation3 + $0xe8] sm:$0xf] %v1359
      %1424 = vst [vmem:[#allocation3 + $0xec] sm:$0xf] %v1360
      %1425 = vst [vmem:[#allocation3 + $0xf0] sm:$0xf] %v1361
      %1426 = vst [vmem:[#allocation3 + $0xf4] sm:$0xf] %v1362
      %1427 = vst [vmem:[#allocation3 + $0xf8] sm:$0xf] %v1363
      %1428 = vst [vmem:[#allocation3 + $0xfc] sm:$0xf] %v1364
    $region21: #{gemm.1} parent=1 // pred_fallthru
      _
    // Predicated region
    $region22: #{gemm.1} parent=1 // pred_check
      _
    $region23: #{gemm.1} parent=1 // pred_check_branch
      %1430 = sbr.rel (0) target = $region25
    $region24: #{gemm.1} parent=1 // pred_region
      %1432 = vsyncadd [#allocation4], 0
      %s1433 = sshll.u32 [#allocation3], 4
      %s1434 = int_to_ptr.vmem [resolvable:$true] %s1433
      %s1435 = sshll.u32 %s3, 4
      %s1436 = int_to_ptr.hbm [resolvable:$true] %s1435
      %1441 = dma.vmem_to_hbm [thread:$0]  %s1434, 4096, %s1436, [#allocation4], 64, 64, 4
    $region25: #{gemm.1} parent=1 // pred_fallthru
      _
    // Predicated region
    $region26: #{gemm.1} parent=1 // pred_check
      _
    $region27: #{gemm.1} parent=1 // pred_check_branch
      %1443 = sbr.rel (0) target = $region29
    $region28: #{gemm.1} parent=1 // pred_region
      %1445 = dma.done [#allocation4], 4096
    $region29: #{gemm.1} parent=1 // pred_fallthru
      _
    %1446 = vsyncpa [#allocation4], 1

</llo_original>
